<compile_context>
chip_gen: v5e
topology: v5e:2x2
jax: 0.10.0
libtpu: 0.0.40
codegen_flags: <defaults>
</compile_context>

<pallas_src>
import math
import functools

import jax
import jax.numpy as jnp
from jax.experimental import pallas as pl
from jax.experimental.pallas import tpu as pltpu


# ---------------------------------------------------------------------------
# Pallas kernel: the entire GNN stack (grid axis = layer index)
# ---------------------------------------------------------------------------

def _gnn_stack_kernel(
    x_ref, ea_ref, src_oh_ref, dst_mask_ref,
    w_node_ref, b_node_ref, we_ref, lin_w_ref, lin_b_ref,
    out_ref,
    h_ref,                       # VMEM scratch: hidden state carried across layers
    *, heads: int, out_ch: int,
):
    layer = pl.program_id(0)
    n_layers = pl.num_programs(0)
    hc = heads * out_ch

    # Layer 0 consumes the (padded) input node features.
    @pl.when(layer == 0)
    def _():
        h_ref[...] = x_ref[...].astype(jnp.float32)

    h = h_ref[...]                                        # (N, Dpad)
    src_oh = src_oh_ref[...].astype(jnp.float32)          # (E, N), exact 0/1 from bf16
    dst_mask = dst_mask_ref[...].astype(jnp.float32)      # (N, E), exact 0/1 from bf16
    n_nodes = h.shape[0]
    n_edges = src_oh.shape[0]

    # ---- fused node-side projection: [q | k | v | skip] in a single MXU pass ----
    proj = (jnp.dot(h, w_node_ref[...], preferred_element_type=jnp.float32)
            + b_node_ref[...])                            # (N, 4*H*C)
    scale = jnp.float32(1.0 / math.sqrt(out_ch))
    q = proj[:, :hc] * scale                              # (N, H*C)  scale folded into q
    kv = proj[:, hc:3 * hc]                               # (N, 2*H*C) = [k | v]
    skip = proj[:, 3 * hc:]                               # (N, H*C)

    # ---- edge-feature projection (lin_edge has no bias in PyG TransformerConv) ----
    e_feat = jnp.dot(ea_ref[...].astype(jnp.float32), we_ref[...],
                     preferred_element_type=jnp.float32)  # (E, H*C)

    # ---- fused one-hot gather of per-edge source-node [k | v] ----
    kv_src = jnp.dot(src_oh, kv, preferred_element_type=jnp.float32)   # (E, 2*H*C)
    k_src = kv_src[:, :hc] + e_feat
    v_src = kv_src[:, hc:] + e_feat

    # ---- head-batched attention (no per-head Python loop, natural layouts) ----
    q3 = q.reshape(n_nodes, heads, out_ch)                              # (N, H, C)
    k3 = k_src.reshape(n_edges, heads, out_ch)                          # (E, H, C)
    v3 = v_src.reshape(n_edges, heads, out_ch)                          # (E, H, C)

    scores = jnp.einsum("nhc,ehc->hne", q3, k3,
                        preferred_element_type=jnp.float32)             # (H, N, E)

    # Additive mask (single VPU add instead of compare+select).
    mask_add = (dst_mask - 1.0) * jnp.float32(1e30)                     # 0 valid / -1e30 invalid
    masked = scores + mask_add[None, :, :]

    # Per-destination softmax over incoming edges. The `* dst_mask` keeps
    # isolated destination nodes (no incoming edge) at exactly alpha == 0.
    m = jnp.max(masked, axis=-1, keepdims=True)
    p = jnp.exp(masked - m) * dst_mask[None, :, :]
    denom = jnp.sum(p, axis=-1, keepdims=True)
    alpha = p * pl.reciprocal(jnp.maximum(denom, 1e-16), approx=True)   # EUP slot, ~free

    # Scatter-sum aggregation: agg[i, h, :] = sum_e alpha[h, i, e] * v_src[e, h, :].
    agg = jnp.einsum("hne,ehc->nhc", alpha, v3,
                     preferred_element_type=jnp.float32).reshape(n_nodes, hc)

    # Skip connection + ReLU (dropout = identity at inference).
    h_new = jnp.maximum(agg + skip, 0.0)

    # Carry hidden state to the next layer (padding columns keep their step-0 values,
    # and the corresponding zero-padded weight rows of later layers nullify them).
    h_ref[:, :hc] = h_new

    # Fused final Linear(H*C -> output_dim) on the last layer's epilogue.
    @pl.when(layer == n_layers - 1)
    def _():
        out_ref[...] = (
            jnp.dot(h_new, lin_w_ref[...], preferred_element_type=jnp.float32)
            + lin_b_ref[...]
        ).astype(out_ref.dtype)


# ---------------------------------------------------------------------------
# Host-side wrappers
# ---------------------------------------------------------------------------

def _pack_layer_params(lp, dpad):
    """Concatenate wq|wk|wv|wskip along the output axis; zero-pad input dim to dpad."""
    w = jnp.concatenate([lp["wq"], lp["wk"], lp["wv"], lp["wskip"]], axis=1)
    if w.shape[0] < dpad:
        w = jnp.pad(w, ((0, dpad - w.shape[0]), (0, 0)))
    b = jnp.concatenate([lp["bq"], lp["bk"], lp["bv"], lp["bskip"]], axis=1)
    return w, b, lp["we"]


def gnn_stack_forward(x, edge_index, edge_attr, params, *, heads, out_ch):
    """x: (N, node_dim) f32, edge_index: (2, E) int32, edge_attr: (E, edge_dim) f32."""
    num_node, node_dim = x.shape
    num_edge, edge_dim = edge_attr.shape
    hidden = heads * out_ch
    out_dim = params["lin_w"].shape[1]
    num_block = len(params["layers"])
    dpad = max(node_dim, hidden)          # common layer-input width across the stack

    # Dense gather/scatter operators in bf16 (exact for 0/1, half HBM/VMEM bytes).
    src, dst = edge_index[0], edge_index[1]
    node_ids = jnp.arange(num_node, dtype=jnp.int32)
    src_onehot = (src[:, None] == node_ids[None, :]).astype(jnp.bfloat16)   # (E, N)
    dst_mask = (node_ids[:, None] == dst[None, :]).astype(jnp.bfloat16)     # (N, E)

    x_pad = x if node_dim == dpad else jnp.pad(x, ((0, 0), (0, dpad - node_dim)))

    packed = [_pack_layer_params(lp, dpad) for lp in params["layers"]]
    w_node = jnp.stack([p[0] for p in packed], axis=0)      # (L, dpad, 4*hidden)
    b_node = jnp.stack([p[1] for p in packed], axis=0)      # (L, 1, 4*hidden)
    we = jnp.stack([p[2] for p in packed], axis=0)          # (L, edge_dim, hidden)

    # Explicit VMEM budget: resident operands + double-buffered per-layer weights
    # + the main (H, N, E) temporaries; clamped to what is safe on v5e/v6e/v7x.
    def nbytes(*arrs):
        return sum(int(a.size) * a.dtype.itemsize for a in arrs)
    resident = (nbytes(x_pad, edge_attr, src_onehot, dst_mask,
                       params["lin_w"], params["lin_b"])
                + num_node * (dpad + out_dim) * 4)
    per_layer = 2 * 4 * (dpad * 4 * hidden + 4 * hidden + edge_dim * hidden)
    temps = 4 * (4 * heads * num_node * num_edge
                 + num_node * 4 * hidden + 3 * num_edge * hidden)
    vmem_limit = int(min(max(2 * (resident + per_layer + temps), 16 << 20), 64 << 20))

    # Advisory cost hint for the XLA scheduler around the custom call.
    flops_per_layer = 2 * (num_node * dpad * 4 * hidden          # node projection
                           + num_edge * edge_dim * hidden        # edge projection
                           + num_edge * num_node * 2 * hidden    # one-hot gather
                           + 2 * heads * num_node * num_edge * out_ch)  # scores + agg
    cost = pl.CostEstimate(
        flops=num_block * flops_per_layer + 2 * num_node * hidden * out_dim,
        transcendentals=num_block * (heads * num_node * num_edge + heads * num_node),
        bytes_accessed=(nbytes(x_pad, edge_attr, src_onehot, dst_mask,
                               w_node, b_node, we, params["lin_w"], params["lin_b"])
                        + num_node * out_dim * 4),
    )

    kernel = functools.partial(_gnn_stack_kernel, heads=heads, out_ch=out_ch)
    const2 = lambda l: (0, 0)          # resident across all layers (DMA'd once)
    per_layer3 = lambda l: (l, 0, 0)   # streamed per layer (double-buffered)

    return pl.pallas_call(
        kernel,
        out_shape=jax.ShapeDtypeStruct((num_node, out_dim), jnp.float32),
        grid=(num_block,),
        in_specs=[
            pl.BlockSpec((num_node, dpad), const2),              # x (padded)
            pl.BlockSpec((num_edge, edge_dim), const2),          # edge_attr
            pl.BlockSpec((num_edge, num_node), const2),          # src_onehot (bf16)
            pl.BlockSpec((num_node, num_edge), const2),          # dst_mask   (bf16)
            pl.BlockSpec((None, dpad, 4 * hidden), per_layer3),  # stacked node weights
            pl.BlockSpec((None, 1, 4 * hidden), per_layer3),     # stacked node biases
            pl.BlockSpec((None, edge_dim, hidden), per_layer3),  # stacked edge weights
            pl.BlockSpec((hidden, out_dim), const2),             # final linear W
            pl.BlockSpec((1, out_dim), const2),                  # final linear b
        ],
        out_specs=pl.BlockSpec((num_node, out_dim), const2),
        scratch_shapes=[pltpu.VMEM((num_node, dpad), jnp.float32)],
        compiler_params=pltpu.CompilerParams(
            dimension_semantics=("arbitrary",),   # layers are strictly sequential
            vmem_limit_bytes=vmem_limit,
        ),
        cost_estimate=cost,
    )(x_pad, edge_attr, src_onehot, dst_mask, w_node, b_node, we,
      params["lin_w"], params["lin_b"])


def _dynamic_gnn_features(batched_graph, timestamp_enc_dim):
    """DynamicGNN input assembly (ZeroPositionalEncoder path)."""
    half = timestamp_enc_dim // 2
    n = batched_graph["x"].shape[0]
    m = batched_graph["edge_attr"].shape[0]
    node_ts = jnp.zeros(batched_graph["node_last_update"].shape + (half,),
                        jnp.float32).reshape(n, -1)
    edge_ts = jnp.zeros(batched_graph["edge_last_update"].shape + (half,),
                        jnp.float32).reshape(m, -1)
    x = jnp.concatenate([batched_graph["x"], node_ts], axis=-1)
    edge_attr = jnp.concatenate([batched_graph["edge_attr"], edge_ts], axis=-1)
    return x, edge_attr


def dynamic_gnn_forward(batched_graph, params, *, timestamp_enc_dim, heads, out_ch):
    x, edge_attr = _dynamic_gnn_features(batched_graph, timestamp_enc_dim)
    return gnn_stack_forward(x, batched_graph["edge_index"], edge_attr, params,
                             heads=heads, out_ch=out_ch)


# ---------------------------------------------------------------------------
# Pure-JAX reference (PyG TransformerConv semantics) for verification
# ---------------------------------------------------------------------------

def _gnn_stack_reference(x, edge_index, edge_attr, params, *, heads, out_ch):
    num_node = x.shape[0]
    src, dst = edge_index[0], edge_index[1]
    hc = heads * out_ch
    dst_mask = (jnp.arange(num_node)[:, None] == dst[None, :]).astype(jnp.float32)
    h = x
    for lp in params["layers"]:
        q = h @ lp["wq"] + lp["bq"]
        k = h @ lp["wk"] + lp["bk"]
        v = h @ lp["wv"] + lp["bv"]
        e = edge_attr @ lp["we"]
        k_src = k[src] + e
        v_src = v[src] + e
        q3 = q.reshape(num_node, heads, out_ch)
        k3 = k_src.reshape(-1, heads, out_ch)
        v3 = v_src.reshape(-1, heads, out_ch)
        scores = jnp.einsum("nhc,ehc->hne", q3, k3,
                            precision="highest") / math.sqrt(out_ch)
        masked = jnp.where(dst_mask[None] > 0, scores, -1e30)
        m = jnp.max(masked, axis=-1, keepdims=True)
        p = jnp.exp(masked - m) * dst_mask[None]
        denom = jnp.maximum(jnp.sum(p, axis=-1, keepdims=True), 1e-16)
        alpha = p / denom
        agg = jnp.einsum("hne,ehc->nhc", alpha, v3,
                         precision="highest").reshape(num_node, hc)
        skip = h @ lp["wskip"] + lp["bskip"]
        h = jnp.maximum(agg + skip, 0.0)
    return h @ params["lin_w"] + params["lin_b"]


# ---------------------------------------------------------------------------
# Deterministic parameter init (matches GNNStack.__init__ shapes)
# ---------------------------------------------------------------------------

def init_params(key, *, node_dim, edge_dim, output_dim, num_block, heads):
    hidden = heads * output_dim

    def lin(key, fan_in, fan_out, bias=True):
        kw, kb = jax.random.split(key)
        scale = 1.0 / math.sqrt(fan_in)
        w = jax.random.uniform(kw, (fan_in, fan_out), jnp.float32, -scale, scale)
        b = (jax.random.uniform(kb, (1, fan_out), jnp.float32, -scale, scale)
             if bias else None)
        return w, b

    layers = []
    for i in range(num_block):
        in_dim = node_dim if i == 0 else hidden
        key, *ks = jax.random.split(key, 6)
        wq, bq = lin(ks[0], in_dim, hidden)
        wk, bk = lin(ks[1], in_dim, hidden)
        wv, bv = lin(ks[2], in_dim, hidden)
        we, _ = lin(ks[3], edge_dim, hidden, bias=False)
        wskip, bskip = lin(ks[4], in_dim, hidden)
        layers.append(dict(wq=wq, bq=bq, wk=wk, bk=bk, wv=wv, bv=bv,
                           we=we, wskip=wskip, bskip=bskip))
    key, kl = jax.random.split(key)
    lw, lb = lin(kl, hidden, output_dim)
    return dict(layers=layers, lin_w=lw, lin_b=lb)


# ---------------------------------------------------------------------------
# Demo
# ---------------------------------------------------------------------------

if __name__ == "__main__":
    EVENT_DIM, TS_DIM = 8, 8                 # node_dim = edge_dim = 16
    OUTPUT_DIM, NUM_BLOCK, HEADS = 8, 2, 4   # hidden = 32
    NUM_NODE, NUM_EDGE = 16, 32
    node_dim = edge_dim = EVENT_DIM + TS_DIM

    root = jax.random.PRNGKey(0)
    kx, ke, ks, kd, kp = jax.random.split(root, 5)

    x_raw = jax.random.normal(kx, (NUM_NODE, EVENT_DIM), jnp.float32)
    ea_raw = jax.random.normal(ke, (NUM_EDGE, EVENT_DIM), jnp.float32)
    src = jax.random.randint(ks, (NUM_EDGE,), 0, NUM_NODE, jnp.int32)
    dst = jax.random.randint(kd, (NUM_EDGE,), 0, NUM_NODE, jnp.int32)
    edge_index = jnp.stack([src, dst], axis=0)

    batched_graph = dict(
        x=x_raw,
        node_last_update=jnp.zeros((NUM_NODE, 2), jnp.float32),
        edge_index=edge_index,
        edge_attr=ea_raw,
        edge_last_update=jnp.zeros((NUM_EDGE, 2), jnp.float32),
    )

    params = init_params(kp, node_dim=node_dim, edge_dim=edge_dim,
                         output_dim=OUTPUT_DIM, num_block=NUM_BLOCK, heads=HEADS)

    out = dynamic_gnn_forward(batched_graph, params,
                              timestamp_enc_dim=TS_DIM, heads=HEADS, out_ch=OUTPUT_DIM)
    out = jax.block_until_ready(out)

    assert out.shape == (NUM_NODE, OUTPUT_DIM), out.shape
    assert bool(jnp.all(jnp.isfinite(out)))

    # Cross-check against a pure-JAX reference using real indexed gathers.
    x_cat, ea_cat = _dynamic_gnn_features(batched_graph, TS_DIM)
    ref = _gnn_stack_reference(x_cat, edge_index, ea_cat, params,
                               heads=HEADS, out_ch=OUTPUT_DIM)
    assert bool(jnp.allclose(out, ref, atol=5e-2, rtol=5e-2)), \
        float(jnp.max(jnp.abs(out - ref)))

    print("KERNEL_OK")
</pallas_src>

<mosaic_0001>
module attributes {stable_mosaic.version = 11 : i64} {
  func.func @_gnn_stack_kernel(%arg0: i32, %arg1: memref<16x32xf32, #tpu.memory_space<vmem>>, %arg2: memref<32x16xf32, #tpu.memory_space<vmem>>, %arg3: memref<32x16xbf16, #tpu.memory_space<vmem>>, %arg4: memref<16x32xbf16, #tpu.memory_space<vmem>>, %arg5: memref<1x32x128xf32, #tpu.memory_space<vmem>>, %arg6: memref<1x1x128xf32, #tpu.memory_space<vmem>>, %arg7: memref<1x16x32xf32, #tpu.memory_space<vmem>>, %arg8: memref<32x8xf32, #tpu.memory_space<vmem>>, %arg9: memref<1x8xf32, #tpu.memory_space<vmem>>, %arg10: memref<16x8xf32, #tpu.memory_space<vmem>>, %arg11: memref<16x32xf32, #tpu.memory_space<vmem>>) attributes {dimension_semantics = [#tpu.dimension_semantics<arbitrary>], iteration_bounds = array<i64: 2>, scalar_prefetch = 0 : i64, scratch_operands = 1 : i64, tpu.core_type = #tpu.core_type<tc>, window_params = [{pipeline_mode = #tpu.pipeline_mode<synchronous>, transform_indices = @transform_0, window_bounds = array<i64: 16, 32>}, {pipeline_mode = #tpu.pipeline_mode<synchronous>, transform_indices = @transform_1, window_bounds = array<i64: 32, 16>}, {pipeline_mode = #tpu.pipeline_mode<synchronous>, transform_indices = @transform_2, window_bounds = array<i64: 32, 16>}, {pipeline_mode = #tpu.pipeline_mode<synchronous>, transform_indices = @transform_3, window_bounds = array<i64: 16, 32>}, {transform_indices = @transform_4, window_bounds = array<i64: 1, 32, 128>}, {transform_indices = @transform_5, window_bounds = array<i64: 1, 1, 128>}, {transform_indices = @transform_6, window_bounds = array<i64: 1, 16, 32>}, {pipeline_mode = #tpu.pipeline_mode<synchronous>, transform_indices = @transform_7, window_bounds = array<i64: 32, 8>}, {pipeline_mode = #tpu.pipeline_mode<synchronous>, transform_indices = @transform_8, window_bounds = array<i64: 1, 8>}, {pipeline_mode = #tpu.pipeline_mode<synchronous>, transform_indices = @transform_9, window_bounds = array<i64: 16, 8>}]} {
    %c0_i32 = arith.constant 0 : i32
    %0 = arith.cmpi eq, %arg0, %c0_i32 : i32
    %1 = arith.extui %0 : i1 to i32
    %c0_i32_0 = arith.constant 0 : i32
    %2 = arith.cmpi ne, %1, %c0_i32_0 : i32
    scf.if %2 {
      %c0_31 = arith.constant 0 : index
      %c0_32 = arith.constant 0 : index
      %65 = vector.load %arg1[%c0_31, %c0_32] : memref<16x32xf32, #tpu.memory_space<vmem>>, vector<16x32xf32>
      %c0_33 = arith.constant 0 : index
      %c0_34 = arith.constant 0 : index
      %66 = vector.load %arg11[%c0_33, %c0_34] : memref<16x32xf32, #tpu.memory_space<vmem>>, vector<16x32xf32>
      tpu.vector_store %arg11[%c0_33, %c0_34], %65 {strides = array<i32>} : memref<16x32xf32, #tpu.memory_space<vmem>>, vector<16x32xf32>,
    } else {
    }
    %c0 = arith.constant 0 : index
    %c0_1 = arith.constant 0 : index
    %3 = vector.load %arg11[%c0, %c0_1] : memref<16x32xf32, #tpu.memory_space<vmem>>, vector<16x32xf32>
    %c0_2 = arith.constant 0 : index
    %c0_3 = arith.constant 0 : index
    %4 = vector.load %arg3[%c0_2, %c0_3] : memref<32x16xbf16, #tpu.memory_space<vmem>>, vector<32x16xbf16>
    %5 = arith.extf %4 : vector<32x16xbf16> to vector<32x16xf32>
    %c0_4 = arith.constant 0 : index
    %c0_5 = arith.constant 0 : index
    %6 = vector.load %arg4[%c0_4, %c0_5] : memref<16x32xbf16, #tpu.memory_space<vmem>>, vector<16x32xbf16>
    %7 = arith.extf %6 : vector<16x32xbf16> to vector<16x32xf32>
    %c0_6 = arith.constant 0 : index
    %c0_7 = arith.constant 0 : index
    %c0_8 = arith.constant 0 : index
    %8 = vector.load %arg5[%c0_6, %c0_7, %c0_8] : memref<1x32x128xf32, #tpu.memory_space<vmem>>, vector<1x32x128xf32>
    %9 = vector.shape_cast %8 : vector<1x32x128xf32> to vector<32x128xf32>
    %cst = arith.constant dense<0.000000e+00> : vector<16x128xf32>
    %10 = tpu.matmul %3, %9, %cst {dimension_numbers = #tpu.dot_dimension_numbers<[1], [0], [0], [1], [0, 0, 1, 1], [], []>} : vector<16x32xf32>, vector<32x128xf32>, vector<16x128xf32> -> vector<16x128xf32>
    %c0_9 = arith.constant 0 : index
    %c0_10 = arith.constant 0 : index
    %c0_11 = arith.constant 0 : index
    %11 = vector.load %arg6[%c0_9, %c0_10, %c0_11] : memref<1x1x128xf32, #tpu.memory_space<vmem>>, vector<1x1x128xf32>
    %12 = vector.shape_cast %11 : vector<1x1x128xf32> to vector<1x128xf32>
    %13 = vector.broadcast %12 : vector<1x128xf32> to vector<16x128xf32>
    %14 = arith.addf %10, %13 : vector<16x128xf32>
    %15 = vector.extract_strided_slice %14 {offsets = [0, 0], sizes = [16, 32], strides = [1, 1]} : vector<16x128xf32> to vector<16x32xf32>
    %cst_12 = arith.constant 0.353553385 : f32
    %16 = vector.broadcast %cst_12 : f32 to vector<16x32xf32>
    %17 = arith.mulf %15, %16 : vector<16x32xf32>
    %18 = vector.extract_strided_slice %14 {offsets = [0, 32], sizes = [16, 64], strides = [1, 1]} : vector<16x128xf32> to vector<16x64xf32>
    %19 = vector.extract_strided_slice %14 {offsets = [0, 96], sizes = [16, 32], strides = [1, 1]} : vector<16x128xf32> to vector<16x32xf32>
    %c0_13 = arith.constant 0 : index
    %c0_14 = arith.constant 0 : index
    %20 = vector.load %arg2[%c0_13, %c0_14] : memref<32x16xf32, #tpu.memory_space<vmem>>, vector<32x16xf32>
    %c0_15 = arith.constant 0 : index
    %c0_16 = arith.constant 0 : index
    %c0_17 = arith.constant 0 : index
    %21 = vector.load %arg7[%c0_15, %c0_16, %c0_17] : memref<1x16x32xf32, #tpu.memory_space<vmem>>, vector<1x16x32xf32>
    %22 = vector.shape_cast %21 : vector<1x16x32xf32> to vector<16x32xf32>
    %cst_18 = arith.constant dense<0.000000e+00> : vector<32x32xf32>
    %23 = tpu.matmul %20, %22, %cst_18 {dimension_numbers = #tpu.dot_dimension_numbers<[1], [0], [0], [1], [0, 0, 1, 1], [], []>} : vector<32x16xf32>, vector<16x32xf32>, vector<32x32xf32> -> vector<32x32xf32>
    %cst_19 = arith.constant dense<0.000000e+00> : vector<32x64xf32>
    %24 = tpu.matmul %5, %18, %cst_19 {dimension_numbers = #tpu.dot_dimension_numbers<[1], [0], [0], [1], [0, 0, 1, 1], [], []>} : vector<32x16xf32>, vector<16x64xf32>, vector<32x64xf32> -> vector<32x64xf32>
    %25 = vector.extract_strided_slice %24 {offsets = [0, 0], sizes = [32, 32], strides = [1, 1]} : vector<32x64xf32> to vector<32x32xf32>
    %26 = arith.addf %25, %23 : vector<32x32xf32>
    %27 = vector.extract_strided_slice %24 {offsets = [0, 32], sizes = [32, 32], strides = [1, 1]} : vector<32x64xf32> to vector<32x32xf32>
    %28 = arith.addf %27, %23 : vector<32x32xf32>
    %29 = vector.shape_cast %17 : vector<16x32xf32> to vector<16x4x8xf32>
    %30 = vector.shape_cast %26 : vector<32x32xf32> to vector<32x4x8xf32>
    %31 = vector.shape_cast %28 : vector<32x32xf32> to vector<32x4x8xf32>
    "tpu.trace_start"() <{level = 10 : i32, message = "nhc,ehc->hne"}> : () -> ()
    %cst_20 = arith.constant dense<0.000000e+00> : vector<4x16x32xf32>
    %32 = tpu.matmul %29, %30, %cst_20 {dimension_numbers = #tpu.dot_dimension_numbers<[2], [2], [0], [0], [0, 1, 0, 0, 1, 0], [1], [1]>} : vector<16x4x8xf32>, vector<32x4x8xf32>, vector<4x16x32xf32> -> vector<4x16x32xf32>
    "tpu.trace_stop"() : () -> ()
    %cst_21 = arith.constant 1.000000e+00 : f32
    %33 = vector.broadcast %cst_21 : f32 to vector<16x32xf32>
    %34 = arith.subf %7, %33 : vector<16x32xf32>
    %cst_22 = arith.constant 1.000000e+30 : f32
    %35 = vector.broadcast %cst_22 : f32 to vector<16x32xf32>
    %36 = arith.mulf %34, %35 : vector<16x32xf32>
    %37 = vector.shape_cast %36 : vector<16x32xf32> to vector<1x16x32xf32>
    %38 = vector.broadcast %37 : vector<1x16x32xf32> to vector<4x16x32xf32>
    %39 = arith.addf %32, %38 : vector<4x16x32xf32>
    %cst_23 = arith.constant dense<0xFF800000> : vector<4x16xf32>
    %40 = vector.multi_reduction <maximumf>, %39, %cst_23 [2] : vector<4x16x32xf32> to vector<4x16xf32>
    %41 = vector.shape_cast %40 : vector<4x16xf32> to vector<4x16x1xf32>
    %42 = vector.broadcast %41 : vector<4x16x1xf32> to vector<4x16x32xf32>
    %43 = arith.subf %39, %42 : vector<4x16x32xf32>
    %44 = math.exp %43 : vector<4x16x32xf32>
    %45 = vector.shape_cast %7 : vector<16x32xf32> to vector<1x16x32xf32>
    %46 = vector.broadcast %45 : vector<1x16x32xf32> to vector<4x16x32xf32>
    %47 = arith.mulf %44, %46 : vector<4x16x32xf32>
    %cst_24 = arith.constant dense<0.000000e+00> : vector<4x16xf32>
    %48 = vector.multi_reduction <add>, %47, %cst_24 [2] : vector<4x16x32xf32> to vector<4x16xf32>
    %49 = vector.shape_cast %48 : vector<4x16xf32> to vector<4x16x1xf32>
    %cst_25 = arith.constant 1.000000e-16 : f32
    %50 = vector.broadcast %cst_25 : f32 to vector<4x16x1xf32>
    %51 = arith.maximumf %49, %50 : vector<4x16x1xf32>
    %52 = tpu.reciprocal %51 {approx = true} : vector<4x16x1xf32> -> vector<4x16x1xf32>
    %53 = vector.broadcast %52 : vector<4x16x1xf32> to vector<4x16x32xf32>
    %54 = arith.mulf %47, %53 : vector<4x16x32xf32>
    "tpu.trace_start"() <{level = 10 : i32, message = "hne,ehc->nhc"}> : () -> ()
    %cst_26 = arith.constant dense<0.000000e+00> : vector<4x8x16xf32>
    %55 = tpu.matmul %31, %54, %cst_26 {dimension_numbers = #tpu.dot_dimension_numbers<[0], [2], [2], [1], [0, 1, 0, 2, 1, 1], [1], [0]>} : vector<32x4x8xf32>, vector<4x16x32xf32>, vector<4x8x16xf32> -> vector<4x8x16xf32>
    %56 = tpu.transpose %55, [2, 0, 1] : vector<4x8x16xf32> -> vector<16x4x8xf32>
    "tpu.trace_stop"() : () -> ()
    %57 = vector.shape_cast %56 : vector<16x4x8xf32> to vector<16x32xf32>
    %58 = arith.addf %57, %19 : vector<16x32xf32>
    %cst_27 = arith.constant 0.000000e+00 : f32
    %59 = vector.broadcast %cst_27 : f32 to vector<16x32xf32>
    %60 = arith.maximumf %58, %59 : vector<16x32xf32>
    %c0_28 = arith.constant 0 : index
    %c0_29 = arith.constant 0 : index
    %61 = vector.load %arg11[%c0_28, %c0_29] : memref<16x32xf32, #tpu.memory_space<vmem>>, vector<16x32xf32>
    tpu.vector_store %arg11[%c0_28, %c0_29], %60 {strides = array<i32>} : memref<16x32xf32, #tpu.memory_space<vmem>>, vector<16x32xf32>,
    %c1_i32 = arith.constant 1 : i32
    %62 = arith.cmpi eq, %arg0, %c1_i32 : i32
    %63 = arith.extui %62 : i1 to i32
    %c0_i32_30 = arith.constant 0 : i32
    %64 = arith.cmpi ne, %63, %c0_i32_30 : i32
    scf.if %64 {
      %c0_31 = arith.constant 0 : index
      %c0_32 = arith.constant 0 : index
      %65 = vector.load %arg8[%c0_31, %c0_32] : memref<32x8xf32, #tpu.memory_space<vmem>>, vector<32x8xf32>
      %cst_33 = arith.constant dense<0.000000e+00> : vector<16x8xf32>
      %66 = tpu.matmul %60, %65, %cst_33 {dimension_numbers = #tpu.dot_dimension_numbers<[1], [0], [0], [1], [0, 0, 1, 1], [], []>} : vector<16x32xf32>, vector<32x8xf32>, vector<16x8xf32> -> vector<16x8xf32>
      %c0_34 = arith.constant 0 : index
      %c0_35 = arith.constant 0 : index
      %67 = vector.load %arg9[%c0_34, %c0_35] : memref<1x8xf32, #tpu.memory_space<vmem>>, vector<1x8xf32>
      %68 = vector.broadcast %67 : vector<1x8xf32> to vector<16x8xf32>
      %69 = arith.addf %66, %68 : vector<16x8xf32>
      %c0_36 = arith.constant 0 : index
      %c0_37 = arith.constant 0 : index
      %70 = vector.load %arg10[%c0_36, %c0_37] : memref<16x8xf32, #tpu.memory_space<vmem>>, vector<16x8xf32>
      tpu.vector_store %arg10[%c0_36, %c0_37], %69 {strides = array<i32>} : memref<16x8xf32, #tpu.memory_space<vmem>>, vector<16x8xf32>,
    } else {
    }
    return
  }
  func.func @transform_0(%arg0: i32) -> (i32, i32) {
    %c0_i32 = arith.constant 0 : i32
    %c0_i32_0 = arith.constant 0 : i32
    %c0_i32_1 = arith.constant 0 : i32
    return %c0_i32, %c0_i32_0 : i32, i32
  }
  func.func @transform_1(%arg0: i32) -> (i32, i32) {
    %c0_i32 = arith.constant 0 : i32
    %c0_i32_0 = arith.constant 0 : i32
    %c0_i32_1 = arith.constant 0 : i32
    return %c0_i32, %c0_i32_0 : i32, i32
  }
  func.func @transform_2(%arg0: i32) -> (i32, i32) {
    %c0_i32 = arith.constant 0 : i32
    %c0_i32_0 = arith.constant 0 : i32
    %c0_i32_1 = arith.constant 0 : i32
    return %c0_i32, %c0_i32_0 : i32, i32
  }
  func.func @transform_3(%arg0: i32) -> (i32, i32) {
    %c0_i32 = arith.constant 0 : i32
    %c0_i32_0 = arith.constant 0 : i32
    %c0_i32_1 = arith.constant 0 : i32
    return %c0_i32, %c0_i32_0 : i32, i32
  }
  func.func @transform_4(%arg0: i32) -> (i32, i32, i32) {
    %c0_i32 = arith.constant 0 : i32
    %c0_i32_0 = arith.constant 0 : i32
    %c0_i32_1 = arith.constant 0 : i32
    return %arg0, %c0_i32, %c0_i32_0 : i32, i32, i32
  }
  func.func @transform_5(%arg0: i32) -> (i32, i32, i32) {
    %c0_i32 = arith.constant 0 : i32
    %c0_i32_0 = arith.constant 0 : i32
    %c0_i32_1 = arith.constant 0 : i32
    return %arg0, %c0_i32, %c0_i32_0 : i32, i32, i32
  }
  func.func @transform_6(%arg0: i32) -> (i32, i32, i32) {
    %c0_i32 = arith.constant 0 : i32
    %c0_i32_0 = arith.constant 0 : i32
    %c0_i32_1 = arith.constant 0 : i32
    return %arg0, %c0_i32, %c0_i32_0 : i32, i32, i32
  }
  func.func @transform_7(%arg0: i32) -> (i32, i32) {
    %c0_i32 = arith.constant 0 : i32
    %c0_i32_0 = arith.constant 0 : i32
    %c0_i32_1 = arith.constant 0 : i32
    return %c0_i32, %c0_i32_0 : i32, i32
  }
  func.func @transform_8(%arg0: i32) -> (i32, i32) {
    %c0_i32 = arith.constant 0 : i32
    %c0_i32_0 = arith.constant 0 : i32
    %c0_i32_1 = arith.constant 0 : i32
    return %c0_i32, %c0_i32_0 : i32, i32
  }
  func.func @transform_9(%arg0: i32) -> (i32, i32) {
    %c0_i32 = arith.constant 0 : i32
    %c0_i32_0 = arith.constant 0 : i32
    %c0_i32_1 = arith.constant 0 : i32
    return %c0_i32, %c0_i32_0 : i32, i32
  }
}

</mosaic_0001>

<llo_original>
// kernel: tpu_custom_call.1
$region0: #{tpu_custom_call.1}
  #allocation0 [shape = 'u32[]', space=smem, size = 0x4, offset = 0x4, fixed_abs, tag = 'smem constant byte address 0x4 - core index']
  #allocation1 [shape = 'u32[72,128]{1,0:T(1,128)}', space=vmem, size = 0x9000, scoped, tag = 'internal scratch']
  #allocation2 [shape = 'f32[16,32]{1,0:T(8,128)}', space=vmem, size = 0x2000, scoped, tag = 'scratch operand']
  %s0 = inlined_call_operand.vmem [shape: f32[16,32], index: 0, kind: input, shape index: {}]
  %s1 = inlined_call_operand.vmem [shape: f32[32,16], index: 1, kind: input, shape index: {}]
  %s2 = inlined_call_operand.vmem [shape: bf16[32,16], index: 2, kind: input, shape index: {}]
  %s3 = inlined_call_operand.hbm [shape: bf16[16,32], index: 3, kind: input, shape index: {}]
  %s4 = inlined_call_operand.vmem [shape: f32[2,32,128], index: 4, kind: input, shape index: {}]
  %s5 = inlined_call_operand.vmem [shape: f32[2,1,128], index: 5, kind: input, shape index: {}]
  %s6 = inlined_call_operand.vmem [shape: f32[2,16,32], index: 6, kind: input, shape index: {}]
  %s7 = inlined_call_operand.vmem [shape: f32[32,8], index: 7, kind: input, shape index: {}]
  %s8 = inlined_call_operand.vmem [shape: f32[1,8], index: 8, kind: input, shape index: {}]
  %s9 = inlined_call_operand.vmem [shape: f32[16,8], index: 9, kind: output, shape index: {}]
  %s10 = sld [smem:[#allocation0]]
  $region81: #{tpu_custom_call.1} parent=0
    _
  %s12 = ssub.s32 1, %s10
  %s13 = scalar_select 0, %s12, %s10
  $region1: #{tpu_custom_call.1} parent=0
    #allocation3 [shape = 'u8[4096]{0}', space=vmem, size = 0x1000, scoped, tag = 'input window, operand 3, single buffered']
    #allocation4 [shape = 's32[2]{0}', space=sflag, size = 0x8, scoped, tag = 'scoped memory for tpu_custom_call.1']
    %14 = vsyncpa [#allocation4], 0
    loop: start=0, step=1, limit=4
    $region2: #{tpu_custom_call.1} parent=1 // loop_pre_header
      _
    $region3: #{tpu_custom_call.1} parent=1 // loop_header
      %s16 = sphi 0, %s20
      %p17 = scmp.ge.s32.totalorder %s16, 4
      %s24 = sphi 0, %s24
      %s26 = sphi 0, %s24
      %s27 = sphi 0, %s26
      %s41 = sphi 0, %s27
      %s45 = sphi 0, %s45
      %s47 = sphi 0, %s45
      %s48 = sphi 0, %s47
      %s62 = sphi 0, %s48
      %s66 = sphi 0, %s66
      %s68 = sphi 0, %s66
      %s69 = sphi 0, %s68
      %s83 = sphi 0, %s69
      %s87 = sphi 0, %s87
      %s89 = sphi 0, %s87
      %s90 = sphi 0, %s89
      %s104 = sphi 0, %s90
      %s110 = sphi 0, %s112
      %s113 = sphi 0, %s110
      %s114 = sphi 0, %s113
      %s130 = sphi 0, %s114
      %s136 = sphi 0, %s138
      %s139 = sphi 0, %s136
      %s140 = sphi 0, %s139
      %s156 = sphi 0, %s140
      %s162 = sphi 0, %s164
      %s165 = sphi 0, %s162
      %s166 = sphi 0, %s165
      %s182 = sphi 0, %s166
      %s186 = sphi 0, %s186
      %s188 = sphi 0, %s186
      %s189 = sphi 0, %s188
      %s203 = sphi 0, %s189
      %s207 = sphi 0, %s207
      %s209 = sphi 0, %s207
      %s210 = sphi 0, %s209
      %s224 = sphi 0, %s210
      %s228 = sphi 0, %s228
      %s230 = sphi 0, %s228
      %s231 = sphi 0, %s230
      %s245 = sphi 0, %s231
    $region4: #{tpu_custom_call.1} parent=1 // loop_header_branch
      %19 = sbr.rel (%p17) target = $region8
    $region5: #{tpu_custom_call.1} parent=1 // loop_body
      %s21 = ssub.s32 %s16, 1
      %s22 = ssub.s32 %s16, 2
      %s23 = sadd.s32 %s16, 1
      %s25 = sadd.s32 %s24, 1
      %p28 = scmp.eq.s32.totalorder %s16, 1
      %p29 = scmp.ne.s32.totalorder %s24, %s26
      %p30 = scmp.eq.s32.totalorder %s16, 0
      %p31 = por %p29, %p30
      %p32 = scmp.ne.s32.totalorder %s24, %s26
      %p33 = scmp.eq.s32.totalorder %s21, 1
      %p34 = por %p32, %p33
      %p35 = scmp.ne.s32.totalorder %s26, %s27
      %p36 = scmp.eq.s32.totalorder %s21, 0
      %p37 = por %p35, %p36
      %p38 = scmp.ne.s32.totalorder %s26, %s27
      %p39 = scmp.eq.s32.totalorder %s22, 1
      %p40 = por %p38, %p39
      %p42 = scmp.ne.s32.totalorder %s27, %s41
      %p43 = scmp.eq.s32.totalorder %s22, 0
      %p44 = por %p42, %p43
      %s46 = sadd.s32 %s45, 1
      %p49 = scmp.eq.s32.totalorder %s16, 1
      %p50 = scmp.ne.s32.totalorder %s45, %s47
      %p51 = scmp.eq.s32.totalorder %s16, 0
      %p52 = por %p50, %p51
      %p53 = scmp.ne.s32.totalorder %s45, %s47
      %p54 = scmp.eq.s32.totalorder %s21, 1
      %p55 = por %p53, %p54
      %p56 = scmp.ne.s32.totalorder %s47, %s48
      %p57 = scmp.eq.s32.totalorder %s21, 0
      %p58 = por %p56, %p57
      %p59 = scmp.ne.s32.totalorder %s47, %s48
      %p60 = scmp.eq.s32.totalorder %s22, 1
      %p61 = por %p59, %p60
      %p63 = scmp.ne.s32.totalorder %s48, %s62
      %p64 = scmp.eq.s32.totalorder %s22, 0
      %p65 = por %p63, %p64
      %s67 = sadd.s32 %s66, 1
      %p70 = scmp.eq.s32.totalorder %s16, 1
      %p71 = scmp.ne.s32.totalorder %s66, %s68
      %p72 = scmp.eq.s32.totalorder %s16, 0
      %p73 = por %p71, %p72
      %p74 = scmp.ne.s32.totalorder %s66, %s68
      %p75 = scmp.eq.s32.totalorder %s21, 1
      %p76 = por %p74, %p75
      %p77 = scmp.ne.s32.totalorder %s68, %s69
      %p78 = scmp.eq.s32.totalorder %s21, 0
      %p79 = por %p77, %p78
      %p80 = scmp.ne.s32.totalorder %s68, %s69
      %p81 = scmp.eq.s32.totalorder %s22, 1
      %p82 = por %p80, %p81
      %p84 = scmp.ne.s32.totalorder %s69, %s83
      %p85 = scmp.eq.s32.totalorder %s22, 0
      %p86 = por %p84, %p85
      %s88 = sadd.s32 %s87, 1
      %p91 = scmp.eq.s32.totalorder %s16, 1
      %p92 = scmp.ne.s32.totalorder %s87, %s89
      %p93 = scmp.eq.s32.totalorder %s16, 0
      %p94 = por %p92, %p93
      %p95 = scmp.ne.s32.totalorder %s87, %s89
      %p96 = scmp.eq.s32.totalorder %s21, 1
      %p97 = por %p95, %p96
      %p98 = scmp.ne.s32.totalorder %s89, %s90
      %p99 = scmp.eq.s32.totalorder %s21, 0
      %p100 = por %p98, %p99
      %p101 = scmp.ne.s32.totalorder %s89, %s90
      %p102 = scmp.eq.s32.totalorder %s22, 1
      %p103 = por %p101, %p102
      %p105 = scmp.ne.s32.totalorder %s90, %s104
      %p106 = scmp.eq.s32.totalorder %s22, 0
      %p107 = por %p105, %p106
      %s108 = ssub.s32 %s16, %s23
      %p109 = scmp.eq.s32.totalorder %s108, 0
      %s111 = sadd.s32 %s110, 1
      %s112 = scalar_select %p109, %s110, %s111
      %p115 = pneg %p109
      %p116 = scmp.eq.s32.totalorder %s16, 1
      %p117 = por %p115, %p116
      %p118 = scmp.ne.s32.totalorder %s110, %s113
      %p119 = scmp.eq.s32.totalorder %s16, 0
      %p120 = por %p118, %p119
      %p121 = scmp.ne.s32.totalorder %s110, %s113
      %p122 = scmp.eq.s32.totalorder %s21, 1
      %p123 = por %p121, %p122
      %p124 = scmp.ne.s32.totalorder %s113, %s114
      %p125 = scmp.eq.s32.totalorder %s21, 0
      %p126 = por %p124, %p125
      %p127 = scmp.ne.s32.totalorder %s113, %s114
      %p128 = scmp.eq.s32.totalorder %s22, 1
      %p129 = por %p127, %p128
      %p131 = scmp.ne.s32.totalorder %s114, %s130
      %p132 = scmp.eq.s32.totalorder %s22, 0
      %p133 = por %p131, %p132
      %s134 = ssub.s32 %s16, %s23
      %p135 = scmp.eq.s32.totalorder %s134, 0
      %s137 = sadd.s32 %s136, 1
      %s138 = scalar_select %p135, %s136, %s137
      %p141 = pneg %p135
      %p142 = scmp.eq.s32.totalorder %s16, 1
      %p143 = por %p141, %p142
      %p144 = scmp.ne.s32.totalorder %s136, %s139
      %p145 = scmp.eq.s32.totalorder %s16, 0
      %p146 = por %p144, %p145
      %p147 = scmp.ne.s32.totalorder %s136, %s139
      %p148 = scmp.eq.s32.totalorder %s21, 1
      %p149 = por %p147, %p148
      %p150 = scmp.ne.s32.totalorder %s139, %s140
      %p151 = scmp.eq.s32.totalorder %s21, 0
      %p152 = por %p150, %p151
      %p153 = scmp.ne.s32.totalorder %s139, %s140
      %p154 = scmp.eq.s32.totalorder %s22, 1
      %p155 = por %p153, %p154
      %p157 = scmp.ne.s32.totalorder %s140, %s156
      %p158 = scmp.eq.s32.totalorder %s22, 0
      %p159 = por %p157, %p158
      %s160 = ssub.s32 %s16, %s23
      %p161 = scmp.eq.s32.totalorder %s160, 0
      %s163 = sadd.s32 %s162, 1
      %s164 = scalar_select %p161, %s162, %s163
      %p167 = pneg %p161
      %p168 = scmp.eq.s32.totalorder %s16, 1
      %p169 = por %p167, %p168
      %p170 = scmp.ne.s32.totalorder %s162, %s165
      %p171 = scmp.eq.s32.totalorder %s16, 0
      %p172 = por %p170, %p171
      %p173 = scmp.ne.s32.totalorder %s162, %s165
      %p174 = scmp.eq.s32.totalorder %s21, 1
      %p175 = por %p173, %p174
      %p176 = scmp.ne.s32.totalorder %s165, %s166
      %p177 = scmp.eq.s32.totalorder %s21, 0
      %p178 = por %p176, %p177
      %p179 = scmp.ne.s32.totalorder %s165, %s166
      %p180 = scmp.eq.s32.totalorder %s22, 1
      %p181 = por %p179, %p180
      %p183 = scmp.ne.s32.totalorder %s166, %s182
      %p184 = scmp.eq.s32.totalorder %s22, 0
      %p185 = por %p183, %p184
      %s187 = sadd.s32 %s186, 1
      %p190 = scmp.eq.s32.totalorder %s16, 1
      %p191 = scmp.ne.s32.totalorder %s186, %s188
      %p192 = scmp.eq.s32.totalorder %s16, 0
      %p193 = por %p191, %p192
      %p194 = scmp.ne.s32.totalorder %s186, %s188
      %p195 = scmp.eq.s32.totalorder %s21, 1
      %p196 = por %p194, %p195
      %p197 = scmp.ne.s32.totalorder %s188, %s189
      %p198 = scmp.eq.s32.totalorder %s21, 0
      %p199 = por %p197, %p198
      %p200 = scmp.ne.s32.totalorder %s188, %s189
      %p201 = scmp.eq.s32.totalorder %s22, 1
      %p202 = por %p200, %p201
      %p204 = scmp.ne.s32.totalorder %s189, %s203
      %p205 = scmp.eq.s32.totalorder %s22, 0
      %p206 = por %p204, %p205
      %s208 = sadd.s32 %s207, 1
      %p211 = scmp.eq.s32.totalorder %s16, 1
      %p212 = scmp.ne.s32.totalorder %s207, %s209
      %p213 = scmp.eq.s32.totalorder %s16, 0
      %p214 = por %p212, %p213
      %p215 = scmp.ne.s32.totalorder %s207, %s209
      %p216 = scmp.eq.s32.totalorder %s21, 1
      %p217 = por %p215, %p216
      %p218 = scmp.ne.s32.totalorder %s209, %s210
      %p219 = scmp.eq.s32.totalorder %s21, 0
      %p220 = por %p218, %p219
      %p221 = scmp.ne.s32.totalorder %s209, %s210
      %p222 = scmp.eq.s32.totalorder %s22, 1
      %p223 = por %p221, %p222
      %p225 = scmp.ne.s32.totalorder %s210, %s224
      %p226 = scmp.eq.s32.totalorder %s22, 0
      %p227 = por %p225, %p226
      %s229 = sadd.s32 %s228, 1
      %p232 = scmp.eq.s32.totalorder %s16, 1
      %p233 = scmp.ne.s32.totalorder %s228, %s230
      %p234 = scmp.eq.s32.totalorder %s16, 0
      %p235 = por %p233, %p234
      %p236 = scmp.ne.s32.totalorder %s228, %s230
      %p237 = scmp.eq.s32.totalorder %s21, 1
      %p238 = por %p236, %p237
      %p239 = scmp.ne.s32.totalorder %s230, %s231
      %p240 = scmp.eq.s32.totalorder %s21, 0
      %p241 = por %p239, %p240
      %p242 = scmp.ne.s32.totalorder %s230, %s231
      %p243 = scmp.eq.s32.totalorder %s22, 1
      %p244 = por %p242, %p243
      %p246 = scmp.ne.s32.totalorder %s231, %s245
      %p247 = scmp.eq.s32.totalorder %s22, 0
      %p248 = por %p246, %p247
      %p249 = scmp.le.s32.totalorder 1, %s16
      %p250 = scmp.lt.s32.totalorder %s16, 3
      %p251 = pnand %p249, %p250
      %p252 = pneg %p251
      // Predicated region
      $region9: #{tpu_custom_call.1} parent=5 // pred_check
        _
      $region10: #{tpu_custom_call.1} parent=5 // pred_check_branch
        %254 = sbr.rel (%p251) target = $region12
      $region11: #{tpu_custom_call.1} parent=5 // pred_region
        %s255 = ssub.s32 %s16, 1
        // Predicated region
        $region13: #{tpu_custom_call.1} parent=11 // pred_check
          %p256 = pneg %p37
        $region14: #{tpu_custom_call.1} parent=11 // pred_check_branch
          %258 = sbr.rel (%p256) target = $region16
        $region15: #{tpu_custom_call.1} parent=11 // pred_region
          _
        $region16: #{tpu_custom_call.1} parent=11 // pred_fallthru
          _
        // Predicated region
        $region17: #{tpu_custom_call.1} parent=11 // pred_check
          %p259 = pneg %p58
        $region18: #{tpu_custom_call.1} parent=11 // pred_check_branch
          %261 = sbr.rel (%p259) target = $region20
        $region19: #{tpu_custom_call.1} parent=11 // pred_region
          _
        $region20: #{tpu_custom_call.1} parent=11 // pred_fallthru
          _
        // Predicated region
        $region21: #{tpu_custom_call.1} parent=11 // pred_check
          %p262 = pneg %p79
        $region22: #{tpu_custom_call.1} parent=11 // pred_check_branch
          %264 = sbr.rel (%p262) target = $region24
        $region23: #{tpu_custom_call.1} parent=11 // pred_region
          _
        $region24: #{tpu_custom_call.1} parent=11 // pred_fallthru
          _
        // Predicated region
        $region25: #{tpu_custom_call.1} parent=11 // pred_check
          %p265 = pneg %p100
        $region26: #{tpu_custom_call.1} parent=11 // pred_check_branch
          %267 = sbr.rel (%p265) target = $region28
        $region27: #{tpu_custom_call.1} parent=11 // pred_region
          %269 = vsyncadd [#allocation4], 0
          %s270 = sshll.u32 %s3, 4
          %s271 = int_to_ptr.hbm [resolvable:$true] %s270
          %s272 = sshll.u32 [#allocation3], 4
          %s273 = int_to_ptr.vmem [resolvable:$true] %s272
          %278 = dma.hbm_to_vmem [thread:$0]  %s271, 128, %s273, [#allocation4], 64, 64, 4
        $region28: #{tpu_custom_call.1} parent=11 // pred_fallthru
          _
        // Predicated region
        $region29: #{tpu_custom_call.1} parent=11 // pred_check
          %p279 = pneg %p199
        $region30: #{tpu_custom_call.1} parent=11 // pred_check_branch
          %281 = sbr.rel (%p279) target = $region32
        $region31: #{tpu_custom_call.1} parent=11 // pred_region
          _
        $region32: #{tpu_custom_call.1} parent=11 // pred_fallthru
          _
        // Predicated region
        $region33: #{tpu_custom_call.1} parent=11 // pred_check
          %p282 = pneg %p220
        $region34: #{tpu_custom_call.1} parent=11 // pred_check_branch
          %284 = sbr.rel (%p282) target = $region36
        $region35: #{tpu_custom_call.1} parent=11 // pred_region
          _
        $region36: #{tpu_custom_call.1} parent=11 // pred_fallthru
          _
      $region12: #{tpu_custom_call.1} parent=5 // pred_fallthru
        _
      %p285 = scmp.lt.s32.totalorder %s16, 2
      // Predicated region
      $region37: #{tpu_custom_call.1} parent=5 // pred_check
        %p286 = pneg %p285
      $region38: #{tpu_custom_call.1} parent=5 // pred_check_branch
        %288 = sbr.rel (%p286) target = $region40
      $region39: #{tpu_custom_call.1} parent=5 // pred_region
        // Predicated region
        $region41: #{tpu_custom_call.1} parent=39 // pred_check
          %p289 = pneg %p120
        $region42: #{tpu_custom_call.1} parent=39 // pred_check_branch
          %291 = sbr.rel (%p289) target = $region44
        $region43: #{tpu_custom_call.1} parent=39 // pred_region
          %p292 = scmp.lt.s32.totalorder %s16, 1
          %s293 = scalar_select %p292, %s16, 1
          %s294 = smul.addr %s293, 4
          %s295 = smul.addr %s294, 8
          %s296 = scalar_lea.vmem %s4, %s295
        $region44: #{tpu_custom_call.1} parent=39 // pred_fallthru
          _
        // Predicated region
        $region45: #{tpu_custom_call.1} parent=39 // pred_check
          %p297 = pneg %p146
        $region46: #{tpu_custom_call.1} parent=39 // pred_check_branch
          %299 = sbr.rel (%p297) target = $region48
        $region47: #{tpu_custom_call.1} parent=39 // pred_region
          %p300 = scmp.lt.s32.totalorder %s16, 1
          %s301 = scalar_select %p300, %s16, 1
          %s302 = scalar_lea.vmem %s5, %s301
        $region48: #{tpu_custom_call.1} parent=39 // pred_fallthru
          _
        // Predicated region
        $region49: #{tpu_custom_call.1} parent=39 // pred_check
          %p303 = pneg %p172
        $region50: #{tpu_custom_call.1} parent=39 // pred_check_branch
          %305 = sbr.rel (%p303) target = $region52
        $region51: #{tpu_custom_call.1} parent=39 // pred_region
          %p306 = scmp.lt.s32.totalorder %s16, 1
          %s307 = scalar_select %p306, %s16, 1
          %s308 = smul.addr %s307, 2
          %s309 = smul.addr %s308, 8
          %s310 = scalar_lea.vmem %s6, %s309
        $region52: #{tpu_custom_call.1} parent=39 // pred_fallthru
          _
      $region40: #{tpu_custom_call.1} parent=5 // pred_fallthru
        _
      %p311 = scmp.le.s32.totalorder 1, %s16
      %p312 = scmp.lt.s32.totalorder %s16, 3
      %p313 = pnand %p311, %p312
      %p314 = pneg %p313
      // Predicated region
      $region53: #{tpu_custom_call.1} parent=5 // pred_check
        _
      $region54: #{tpu_custom_call.1} parent=5 // pred_check_branch
        %316 = sbr.rel (%p313) target = $region56
      $region55: #{tpu_custom_call.1} parent=5 // pred_region
        %s317 = ssub.s32 %s16, 1
        // Predicated region
        $region57: #{tpu_custom_call.1} parent=55 // pred_check
          %p318 = pneg %p100
        $region58: #{tpu_custom_call.1} parent=55 // pred_check_branch
          %320 = sbr.rel (%p318) target = $region60
        $region59: #{tpu_custom_call.1} parent=55 // pred_region
          %322 = dma.done [#allocation4], 128
        $region60: #{tpu_custom_call.1} parent=55 // pred_fallthru
          _
        %p323 = pneg %p37
        %p324 = pneg %p34
        %p325 = pneg %p58
        %p326 = pneg %p55
        %p327 = pneg %p79
        %p328 = pneg %p76
        %p329 = pneg %p100
        %p330 = pneg %p97
        %p331 = scmp.lt.s32.totalorder %s21, 1
        %s332 = scalar_select %p331, %s21, 1
        %s333 = smul.addr %s332, 4
        %s334 = smul.addr %s333, 8
        %s335 = scalar_lea.vmem %s4, %s334
        %p336 = pneg %p126
        %p337 = pneg %p123
        %p338 = scmp.lt.s32.totalorder %s21, 1
        %s339 = scalar_select %p338, %s21, 1
        %s340 = scalar_lea.vmem %s5, %s339
        %p341 = pneg %p152
        %p342 = pneg %p149
        %p343 = scmp.lt.s32.totalorder %s21, 1
        %s344 = scalar_select %p343, %s21, 1
        %s345 = smul.addr %s344, 2
        %s346 = smul.addr %s345, 8
        %s347 = scalar_lea.vmem %s6, %s346
        %p348 = pneg %p178
        %p349 = pneg %p175
        %p350 = pneg %p199
        %p351 = pneg %p196
        %p352 = pneg %p220
        %p353 = pneg %p217
        %p354 = pneg %p241
        %p355 = pneg %p238
        %p356 = scmp.lt.s32.totalorder %s21, 1
        %s357 = scalar_select %p356, %s21, 1
        %s358 = smul.addr %s357, 4
        %s359 = smul.addr %s358, 8
        %s360 = scalar_lea.vmem %s4, %s359
        %p361 = scmp.lt.s32.totalorder %s21, 1
        %s362 = scalar_select %p361, %s21, 1
        %s363 = scalar_lea.vmem %s5, %s362
        %p364 = scmp.lt.s32.totalorder %s21, 1
        %s365 = scalar_select %p364, %s21, 1
        %s366 = smul.addr %s365, 2
        %s367 = smul.addr %s366, 8
        %s368 = scalar_lea.vmem %s6, %s367
        %p369 = scmp.eq.s32.totalorder %s21, 0
        // Predicated region
        $region61: #{tpu_custom_call.1} parent=55 // pred_check
          %p370 = pneg %p369
        $region62: #{tpu_custom_call.1} parent=55 // pred_check_branch
          %372 = sbr.rel (%p370) target = $region64
        $region63: #{tpu_custom_call.1} parent=55 // pred_region
          %v373 = vld [vmem:[%s0] sm:$0xff]
          %v374 = vld [vmem:[%s0 + $0x8] sm:$0xff]
          %vm375 = vcmask 261120
          %376 = vst.msk [vmem:[#allocation2] sm:$0xff] %vm375, %v373
          %377 = vst.msk [vmem:[#allocation2 + $0x8] sm:$0xff] %vm375, %v374
        $region64: #{tpu_custom_call.1} parent=55 // pred_fallthru
          _
        %v378 = vld [vmem:[#allocation2] sm:$0xff]
        %v379 = vld [vmem:[#allocation2 + $0x8] sm:$0xff]
        %v380 = vld [vmem:[%s2] sm:$0xf]
        %v381 = vld [vmem:[%s2 + $0x4] sm:$0xf]
        %v382 = vld [vmem:[%s2 + $0x8] sm:$0xf]
        %v383 = vld [vmem:[%s2 + $0xc] sm:$0xf]
        %v384 = vunpack.c.l.bf16 %v380
        %v385 = vunpack.c.l.bf16 %v381
        %v386 = vunpack.c.l.bf16 %v382
        %v387 = vunpack.c.l.bf16 %v383
        %v388 = vld [vmem:[#allocation3] sm:$0xf]
        %v389 = vld [vmem:[#allocation3 + $0x4] sm:$0xf]
        %v390 = vunpack.c.l.bf16 %v388
        %v391 = vunpack.c.l.bf16 %v389
        %v392 = vld [vmem:[%s360] sm:$0xff]
        %v393 = vld [vmem:[%s360 + $0x8] sm:$0xff]
        %v394 = vld [vmem:[%s360 + $0x10] sm:$0xff]
        %v395 = vld [vmem:[%s360 + $0x18] sm:$0xff]
        %v396 = vld [vmem:[%s363] sm:$0x1]
        %v398 = vperm.slane %v396, 0
        %vm400 = vcmask 261120
        %v402 = vsel %vm400, %v378, 0
        %v405 = vsel %vm400, %v379, 0
        %407 = vmatpush.msra.mxu0 0.0
        %408 = vmatpush.msra.mxu0 0.0
        %409 = vmatpush.msra.mxu0 0.0
        %410 = vmatpush.msra.mxu0 0.0
        %411 = vmatpush.msra.mxu0 0.0
        %412 = vmatpush.msra.mxu0 0.0
        %413 = vmatpush.msra.mxu0 0.0
        %414 = vmatpush.msra.mxu0 0.0
        %415 = vmatpush.msra.mxu0 0.0
        %416 = vmatpush.msra.mxu0 0.0
        %417 = vmatpush.msra.mxu0 0.0
        %418 = vmatpush.msra.mxu0 0.0
        %419 = vmatpush.msra.mxu0 %v395
        %420 = vmatpush.msra.mxu0 %v394
        %421 = vmatpush.msra.mxu0 %v393
        %422 = vmatpush.msra.mxu0 %v392
        %423 = vmatmul.f32.gmra.mxu0 %v402
        %v424 = vpop.f32.mrf.mxu0
        %v425 = vadd.f32 %v398, %v424
        %426 = vmatmul.f32.gmra.mxu0 %v405
        %v427 = vpop.f32.mrf.mxu0
        %v428 = vadd.f32 %v398, %v427
        %429 = vdwg.mxu0
        %v430 = vmul.f32 %v425, 0.35355338
        %v431 = vmul.f32 %v428, 0.35355338
        %v432 = vld [vmem:[%s1] sm:$0xff]
        %v433 = vld [vmem:[%s1 + $0x8] sm:$0xff]
        %v434 = vld [vmem:[%s1 + $0x10] sm:$0xff]
        %v435 = vld [vmem:[%s1 + $0x18] sm:$0xff]
        %v436 = vld [vmem:[%s368] sm:$0xff]
        %v437 = vld [vmem:[%s368 + $0x8] sm:$0xff]
        %vm438 = vcmask 130048
        %v440 = vsel %vm438, %v432, 0
        %v443 = vsel %vm438, %v433, 0
        %v446 = vsel %vm438, %v434, 0
        %v449 = vsel %vm438, %v435, 0
        %451 = vmatpush.msra.mxu0 0.0
        %452 = vmatpush.msra.mxu0 0.0
        %453 = vmatpush.msra.mxu0 0.0
        %454 = vmatpush.msra.mxu0 0.0
        %455 = vmatpush.msra.mxu0 0.0
        %456 = vmatpush.msra.mxu0 0.0
        %457 = vmatpush.msra.mxu0 0.0
        %458 = vmatpush.msra.mxu0 0.0
        %459 = vmatpush.msra.mxu0 0.0
        %460 = vmatpush.msra.mxu0 0.0
        %461 = vmatpush.msra.mxu0 0.0
        %462 = vmatpush.msra.mxu0 0.0
        %463 = vmatpush.msra.mxu0 0.0
        %464 = vmatpush.msra.mxu0 0.0
        %465 = vmatpush.msra.mxu0 %v437
        %466 = vmatpush.msra.mxu0 %v436
        %467 = vmatmul.f32.gmra.mxu0 %v440
        %v468 = vpop.f32.mrf.mxu0
        %v469 = vadd.f32 0.0, %v468
        %470 = vmatmul.f32.gmra.mxu0 %v443
        %v471 = vpop.f32.mrf.mxu0
        %v472 = vadd.f32 0.0, %v471
        %473 = vmatmul.f32.gmra.mxu0 %v446
        %v474 = vpop.f32.mrf.mxu0
        %v475 = vadd.f32 0.0, %v474
        %476 = vmatmul.f32.gmra.mxu0 %v449
        %v477 = vpop.f32.mrf.mxu0
        %v478 = vadd.f32 0.0, %v477
        %479 = vdwg.mxu0
        %482 = vrot.lane.b32.xlu0 %v425, 96
        %v483 = vpop.permute.xlu0 %482
        %484 = vrot.lane.b32.xlu0 %v428, 96
        %v485 = vpop.permute.xlu0 %484
        %v489 = vsel %vm438, %v384, 0
        %v492 = vsel %vm438, %v385, 0
        %v495 = vsel %vm438, %v386, 0
        %v498 = vsel %vm438, %v387, 0
        %500 = vmatpush.msra.mxu0 0.0
        %501 = vmatpush.msra.mxu0 0.0
        %502 = vmatpush.msra.mxu0 0.0
        %503 = vmatpush.msra.mxu0 0.0
        %504 = vmatpush.msra.mxu0 0.0
        %505 = vmatpush.msra.mxu0 0.0
        %506 = vmatpush.msra.mxu0 0.0
        %507 = vmatpush.msra.mxu0 0.0
        %508 = vmatpush.msra.mxu0 0.0
        %509 = vmatpush.msra.mxu0 0.0
        %510 = vmatpush.msra.mxu0 0.0
        %511 = vmatpush.msra.mxu0 0.0
        %512 = vmatpush.msra.mxu0 0.0
        %513 = vmatpush.msra.mxu0 0.0
        %514 = vmatpush.msra.mxu0 %v485
        %515 = vmatpush.msra.mxu0 %v483
        %516 = vmatmul.f32.gmra.mxu0 %v489
        %v517 = vpop.f32.mrf.mxu0
        %v518 = vadd.f32 0.0, %v517
        %519 = vmatmul.f32.gmra.mxu0 %v492
        %v520 = vpop.f32.mrf.mxu0
        %v521 = vadd.f32 0.0, %v520
        %522 = vmatmul.f32.gmra.mxu0 %v495
        %v523 = vpop.f32.mrf.mxu0
        %v524 = vadd.f32 0.0, %v523
        %525 = vmatmul.f32.gmra.mxu0 %v498
        %v526 = vpop.f32.mrf.mxu0
        %v527 = vadd.f32 0.0, %v526
        %528 = vdwg.mxu0
        %v529 = vadd.f32 %v518, %v469
        %v530 = vadd.f32 %v521, %v472
        %v531 = vadd.f32 %v524, %v475
        %v532 = vadd.f32 %v527, %v478
        %537 = vrot.lane.b32.xlu0 %v469, 32
        %v538 = vpop.permute.xlu0 %537
        %539 = vrot.lane.b32.xlu0 %v472, 32
        %v540 = vpop.permute.xlu0 %539
        %541 = vrot.lane.b32.xlu0 %v475, 32
        %v542 = vpop.permute.xlu0 %541
        %543 = vrot.lane.b32.xlu0 %v478, 32
        %v544 = vpop.permute.xlu0 %543
        %v549 = vadd.f32 %v518, %v538
        %v550 = vadd.f32 %v521, %v540
        %v551 = vadd.f32 %v524, %v542
        %v552 = vadd.f32 %v527, %v544
        %555 = vrot.lane.b32.xlu0 %v430, 120
        %v556 = vpop.permute.xlu0 %555
        %557 = vrot.lane.b32.xlu0 %v431, 120
        %v558 = vpop.permute.xlu0 %557
        %559 = vrot.lane.b32.xlu0 %v430, 112
        %v560 = vpop.permute.xlu0 %559
        %561 = vrot.lane.b32.xlu0 %v431, 112
        %v562 = vpop.permute.xlu0 %561
        %563 = vrot.lane.b32.xlu0 %v430, 104
        %v564 = vpop.permute.xlu0 %563
        %565 = vrot.lane.b32.xlu0 %v431, 104
        %v566 = vpop.permute.xlu0 %565
        %571 = vrot.lane.b32.xlu0 %v529, 120
        %v572 = vpop.permute.xlu0 %571
        %573 = vrot.lane.b32.xlu0 %v530, 120
        %v574 = vpop.permute.xlu0 %573
        %575 = vrot.lane.b32.xlu0 %v531, 120
        %v576 = vpop.permute.xlu0 %575
        %577 = vrot.lane.b32.xlu0 %v532, 120
        %v578 = vpop.permute.xlu0 %577
        %583 = vrot.lane.b32.xlu0 %v529, 112
        %v584 = vpop.permute.xlu0 %583
        %585 = vrot.lane.b32.xlu0 %v530, 112
        %v586 = vpop.permute.xlu0 %585
        %587 = vrot.lane.b32.xlu0 %v531, 112
        %v588 = vpop.permute.xlu0 %587
        %589 = vrot.lane.b32.xlu0 %v532, 112
        %v590 = vpop.permute.xlu0 %589
        %595 = vrot.lane.b32.xlu0 %v529, 104
        %v596 = vpop.permute.xlu0 %595
        %597 = vrot.lane.b32.xlu0 %v530, 104
        %v598 = vpop.permute.xlu0 %597
        %599 = vrot.lane.b32.xlu0 %v531, 104
        %v600 = vpop.permute.xlu0 %599
        %601 = vrot.lane.b32.xlu0 %v532, 104
        %v602 = vpop.permute.xlu0 %601
        %611 = vrot.lane.b32.xlu0 %v549, 120
        %v612 = vpop.permute.xlu0 %611
        %613 = vrot.lane.b32.xlu0 %v550, 120
        %v614 = vpop.permute.xlu0 %613
        %615 = vrot.lane.b32.xlu0 %v551, 120
        %v616 = vpop.permute.xlu0 %615
        %617 = vrot.lane.b32.xlu0 %v552, 120
        %v618 = vpop.permute.xlu0 %617
        %619 = vrot.lane.b32.xlu0 %v549, 112
        %v620 = vpop.permute.xlu0 %619
        %621 = vrot.lane.b32.xlu0 %v550, 112
        %v622 = vpop.permute.xlu0 %621
        %623 = vrot.lane.b32.xlu0 %v551, 112
        %v624 = vpop.permute.xlu0 %623
        %625 = vrot.lane.b32.xlu0 %v552, 112
        %v626 = vpop.permute.xlu0 %625
        %627 = vrot.lane.b32.xlu0 %v549, 104
        %v628 = vpop.permute.xlu0 %627
        %629 = vrot.lane.b32.xlu0 %v550, 104
        %v630 = vpop.permute.xlu0 %629
        %631 = vrot.lane.b32.xlu0 %v551, 104
        %v632 = vpop.permute.xlu0 %631
        %633 = vrot.lane.b32.xlu0 %v552, 104
        %v634 = vpop.permute.xlu0 %633
        %v635 = vsub.f32 %v390, 1.0
        %v636 = vsub.f32 %v391, 1.0
        %v637 = vmul.f32 %v635, 1e+30
        %v638 = vmul.f32 %v636, 1e+30
        %639 = vxpose.xlu0.b32.start [1/16] %v529, 128
        %640 = vxpose.xlu0.b32.cont [2/16] %v530, 128
        %641 = vxpose.xlu0.b32.cont [3/16] %v531, 128
        %642 = vxpose.xlu0.b32.cont [4/16] %v532, 128
        %643 = vxpose.xlu0.b32.cont [5/16] 0.0, 128
        %644 = vxpose.xlu0.b32.cont [6/16] 0.0, 128
        %645 = vxpose.xlu0.b32.cont [7/16] 0.0, 128
        %646 = vxpose.xlu0.b32.cont [8/16] 0.0, 128
        %647 = vxpose.xlu0.b32.cont [9/16] 0.0, 128
        %648 = vxpose.xlu0.b32.cont [10/16] 0.0, 128
        %649 = vxpose.xlu0.b32.cont [11/16] 0.0, 128
        %650 = vxpose.xlu0.b32.cont [12/16] 0.0, 128
        %651 = vxpose.xlu0.b32.cont [13/16] 0.0, 128
        %652 = vxpose.xlu0.b32.cont [14/16] 0.0, 128
        %653 = vxpose.xlu0.b32.cont [15/16] 0.0, 128
        %654 = vxpose.xlu0.b32.end [16/16] 0.0, 128
        %v655 = vpop.trf.xlu0
        %v656 = vpop.trf.xlu0
        %v657 = vpop.trf.xlu0
        %v658 = vpop.trf.xlu0
        %v659 = vpop.trf.xlu0
        %v660 = vpop.trf.xlu0
        %v661 = vpop.trf.xlu0
        %v662 = vpop.trf.xlu0
        %v663 = vpop.trf.xlu0
        %v664 = vpop.trf.xlu0
        %v665 = vpop.trf.xlu0
        %v666 = vpop.trf.xlu0
        %v667 = vpop.trf.xlu0
        %v668 = vpop.trf.xlu0
        %v669 = vpop.trf.xlu0
        %v670 = vpop.trf.xlu0
        %671 = vxpose.xlu0.b32.start [1/16] %v572, 128
        %672 = vxpose.xlu0.b32.cont [2/16] %v574, 128
        %673 = vxpose.xlu0.b32.cont [3/16] %v576, 128
        %674 = vxpose.xlu0.b32.cont [4/16] %v578, 128
        %675 = vxpose.xlu0.b32.cont [5/16] 0.0, 128
        %676 = vxpose.xlu0.b32.cont [6/16] 0.0, 128
        %677 = vxpose.xlu0.b32.cont [7/16] 0.0, 128
        %678 = vxpose.xlu0.b32.cont [8/16] 0.0, 128
        %679 = vxpose.xlu0.b32.cont [9/16] 0.0, 128
        %680 = vxpose.xlu0.b32.cont [10/16] 0.0, 128
        %681 = vxpose.xlu0.b32.cont [11/16] 0.0, 128
        %682 = vxpose.xlu0.b32.cont [12/16] 0.0, 128
        %683 = vxpose.xlu0.b32.cont [13/16] 0.0, 128
        %684 = vxpose.xlu0.b32.cont [14/16] 0.0, 128
        %685 = vxpose.xlu0.b32.cont [15/16] 0.0, 128
        %686 = vxpose.xlu0.b32.end [16/16] 0.0, 128
        %v687 = vpop.trf.xlu0
        %v688 = vpop.trf.xlu0
        %v689 = vpop.trf.xlu0
        %v690 = vpop.trf.xlu0
        %v691 = vpop.trf.xlu0
        %v692 = vpop.trf.xlu0
        %v693 = vpop.trf.xlu0
        %v694 = vpop.trf.xlu0
        %v695 = vpop.trf.xlu0
        %v696 = vpop.trf.xlu0
        %v697 = vpop.trf.xlu0
        %v698 = vpop.trf.xlu0
        %v699 = vpop.trf.xlu0
        %v700 = vpop.trf.xlu0
        %v701 = vpop.trf.xlu0
        %v702 = vpop.trf.xlu0
        %703 = vxpose.xlu0.b32.start [1/16] %v584, 128
        %704 = vxpose.xlu0.b32.cont [2/16] %v586, 128
        %705 = vxpose.xlu0.b32.cont [3/16] %v588, 128
        %706 = vxpose.xlu0.b32.cont [4/16] %v590, 128
        %707 = vxpose.xlu0.b32.cont [5/16] 0.0, 128
        %708 = vxpose.xlu0.b32.cont [6/16] 0.0, 128
        %709 = vxpose.xlu0.b32.cont [7/16] 0.0, 128
        %710 = vxpose.xlu0.b32.cont [8/16] 0.0, 128
        %711 = vxpose.xlu0.b32.cont [9/16] 0.0, 128
        %712 = vxpose.xlu0.b32.cont [10/16] 0.0, 128
        %713 = vxpose.xlu0.b32.cont [11/16] 0.0, 128
        %714 = vxpose.xlu0.b32.cont [12/16] 0.0, 128
        %715 = vxpose.xlu0.b32.cont [13/16] 0.0, 128
        %716 = vxpose.xlu0.b32.cont [14/16] 0.0, 128
        %717 = vxpose.xlu0.b32.cont [15/16] 0.0, 128
        %718 = vxpose.xlu0.b32.end [16/16] 0.0, 128
        %v719 = vpop.trf.xlu0
        %v720 = vpop.trf.xlu0
        %v721 = vpop.trf.xlu0
        %v722 = vpop.trf.xlu0
        %v723 = vpop.trf.xlu0
        %v724 = vpop.trf.xlu0
        %v725 = vpop.trf.xlu0
        %v726 = vpop.trf.xlu0
        %v727 = vpop.trf.xlu0
        %v728 = vpop.trf.xlu0
        %v729 = vpop.trf.xlu0
        %v730 = vpop.trf.xlu0
        %v731 = vpop.trf.xlu0
        %v732 = vpop.trf.xlu0
        %v733 = vpop.trf.xlu0
        %v734 = vpop.trf.xlu0
        %735 = vxpose.xlu0.b32.start [1/16] %v596, 128
        %736 = vxpose.xlu0.b32.cont [2/16] %v598, 128
        %737 = vxpose.xlu0.b32.cont [3/16] %v600, 128
        %738 = vxpose.xlu0.b32.cont [4/16] %v602, 128
        %739 = vxpose.xlu0.b32.cont [5/16] 0.0, 128
        %740 = vxpose.xlu0.b32.cont [6/16] 0.0, 128
        %741 = vxpose.xlu0.b32.cont [7/16] 0.0, 128
        %742 = vxpose.xlu0.b32.cont [8/16] 0.0, 128
        %743 = vxpose.xlu0.b32.cont [9/16] 0.0, 128
        %744 = vxpose.xlu0.b32.cont [10/16] 0.0, 128
        %745 = vxpose.xlu0.b32.cont [11/16] 0.0, 128
        %746 = vxpose.xlu0.b32.cont [12/16] 0.0, 128
        %747 = vxpose.xlu0.b32.cont [13/16] 0.0, 128
        %748 = vxpose.xlu0.b32.cont [14/16] 0.0, 128
        %749 = vxpose.xlu0.b32.cont [15/16] 0.0, 128
        %750 = vxpose.xlu0.b32.end [16/16] 0.0, 128
        %v751 = vpop.trf.xlu0
        %v752 = vpop.trf.xlu0
        %v753 = vpop.trf.xlu0
        %v754 = vpop.trf.xlu0
        %v755 = vpop.trf.xlu0
        %v756 = vpop.trf.xlu0
        %v757 = vpop.trf.xlu0
        %v758 = vpop.trf.xlu0
        %v759 = vpop.trf.xlu0
        %v760 = vpop.trf.xlu0
        %v761 = vpop.trf.xlu0
        %v762 = vpop.trf.xlu0
        %v763 = vpop.trf.xlu0
        %v764 = vpop.trf.xlu0
        %v765 = vpop.trf.xlu0
        %v766 = vpop.trf.xlu0
        %vm767 = vcmask 64512
        %v768 = vsel %vm767, %v430, 0
        %v770 = vsel %vm767, %v431, 0
        %772 = vmatpush.msra.mxu0 0.0
        %773 = vmatpush.msra.mxu0 0.0
        %774 = vmatpush.msra.mxu0 0.0
        %775 = vmatpush.msra.mxu0 0.0
        %776 = vmatpush.msra.mxu0 0.0
        %777 = vmatpush.msra.mxu0 0.0
        %778 = vmatpush.msra.mxu0 0.0
        %779 = vmatpush.msra.mxu0 0.0
        %780 = vmatpush.msra.mxu0 0.0
        %781 = vmatpush.msra.mxu0 0.0
        %782 = vmatpush.msra.mxu0 0.0
        %783 = vmatpush.msra.mxu0 0.0
        %784 = vmatpush.msra.mxu0 0.0
        %785 = vmatpush.msra.mxu0 0.0
        %786 = vmatpush.msra.mxu0 0.0
        %787 = vmatpush.msra.mxu0 %v655
        %788 = vmatmul.f32.gmra.mxu0 %v768
        %v789 = vpop.f32.mrf.mxu0
        %v790 = vadd.f32 %v637, %v789
        %791 = vmatmul.f32.gmra.mxu0 %v770
        %v792 = vpop.f32.mrf.mxu0
        %v793 = vadd.f32 %v638, %v792
        %794 = vdwg.mxu0
        %v795 = vsel %vm767, %v556, 0
        %v797 = vsel %vm767, %v558, 0
        %799 = vmatpush.msra.mxu0 0.0
        %800 = vmatpush.msra.mxu0 0.0
        %801 = vmatpush.msra.mxu0 0.0
        %802 = vmatpush.msra.mxu0 0.0
        %803 = vmatpush.msra.mxu0 0.0
        %804 = vmatpush.msra.mxu0 0.0
        %805 = vmatpush.msra.mxu0 0.0
        %806 = vmatpush.msra.mxu0 0.0
        %807 = vmatpush.msra.mxu0 0.0
        %808 = vmatpush.msra.mxu0 0.0
        %809 = vmatpush.msra.mxu0 0.0
        %810 = vmatpush.msra.mxu0 0.0
        %811 = vmatpush.msra.mxu0 0.0
        %812 = vmatpush.msra.mxu0 0.0
        %813 = vmatpush.msra.mxu0 0.0
        %814 = vmatpush.msra.mxu0 %v687
        %815 = vmatmul.f32.gmra.mxu0 %v795
        %v816 = vpop.f32.mrf.mxu0
        %v817 = vadd.f32 %v637, %v816
        %818 = vmatmul.f32.gmra.mxu0 %v797
        %v819 = vpop.f32.mrf.mxu0
        %v820 = vadd.f32 %v638, %v819
        %821 = vdwg.mxu0
        %v822 = vsel %vm767, %v560, 0
        %v824 = vsel %vm767, %v562, 0
        %826 = vmatpush.msra.mxu0 0.0
        %827 = vmatpush.msra.mxu0 0.0
        %828 = vmatpush.msra.mxu0 0.0
        %829 = vmatpush.msra.mxu0 0.0
        %830 = vmatpush.msra.mxu0 0.0
        %831 = vmatpush.msra.mxu0 0.0
        %832 = vmatpush.msra.mxu0 0.0
        %833 = vmatpush.msra.mxu0 0.0
        %834 = vmatpush.msra.mxu0 0.0
        %835 = vmatpush.msra.mxu0 0.0
        %836 = vmatpush.msra.mxu0 0.0
        %837 = vmatpush.msra.mxu0 0.0
        %838 = vmatpush.msra.mxu0 0.0
        %839 = vmatpush.msra.mxu0 0.0
        %840 = vmatpush.msra.mxu0 0.0
        %841 = vmatpush.msra.mxu0 %v719
        %842 = vmatmul.f32.gmra.mxu0 %v822
        %v843 = vpop.f32.mrf.mxu0
        %v844 = vadd.f32 %v637, %v843
        %845 = vmatmul.f32.gmra.mxu0 %v824
        %v846 = vpop.f32.mrf.mxu0
        %v847 = vadd.f32 %v638, %v846
        %848 = vdwg.mxu0
        %v849 = vsel %vm767, %v564, 0
        %v851 = vsel %vm767, %v566, 0
        %853 = vmatpush.msra.mxu0 0.0
        %854 = vmatpush.msra.mxu0 0.0
        %855 = vmatpush.msra.mxu0 0.0
        %856 = vmatpush.msra.mxu0 0.0
        %857 = vmatpush.msra.mxu0 0.0
        %858 = vmatpush.msra.mxu0 0.0
        %859 = vmatpush.msra.mxu0 0.0
        %860 = vmatpush.msra.mxu0 0.0
        %861 = vmatpush.msra.mxu0 0.0
        %862 = vmatpush.msra.mxu0 0.0
        %863 = vmatpush.msra.mxu0 0.0
        %864 = vmatpush.msra.mxu0 0.0
        %865 = vmatpush.msra.mxu0 0.0
        %866 = vmatpush.msra.mxu0 0.0
        %867 = vmatpush.msra.mxu0 0.0
        %868 = vmatpush.msra.mxu0 %v751
        %869 = vmatmul.f32.gmra.mxu0 %v849
        %v870 = vpop.f32.mrf.mxu0
        %v871 = vadd.f32 %v637, %v870
        %872 = vmatmul.f32.gmra.mxu0 %v851
        %v873 = vpop.f32.mrf.mxu0
        %v874 = vadd.f32 %v638, %v873
        %875 = vdwg.mxu0
        %v876 = vsel %vm400, %v790, -inf
        %877 = vmax.xlane.f32.xlu0 %v876
        %v878 = vpop.xlane.xlu0 %877
        %v879 = vsel %vm400, %v793, -inf
        %880 = vmax.xlane.f32.xlu0 %v879
        %v881 = vpop.xlane.xlu0 %880
        %v882 = vsel %vm400, %v817, -inf
        %883 = vmax.xlane.f32.xlu0 %v882
        %v884 = vpop.xlane.xlu0 %883
        %v885 = vsel %vm400, %v820, -inf
        %886 = vmax.xlane.f32.xlu0 %v885
        %v887 = vpop.xlane.xlu0 %886
        %v888 = vsel %vm400, %v844, -inf
        %889 = vmax.xlane.f32.xlu0 %v888
        %v890 = vpop.xlane.xlu0 %889
        %v891 = vsel %vm400, %v847, -inf
        %892 = vmax.xlane.f32.xlu0 %v891
        %v893 = vpop.xlane.xlu0 %892
        %v894 = vsel %vm400, %v871, -inf
        %895 = vmax.xlane.f32.xlu0 %v894
        %v896 = vpop.xlane.xlu0 %895
        %v897 = vsel %vm400, %v874, -inf
        %898 = vmax.xlane.f32.xlu0 %v897
        %v899 = vpop.xlane.xlu0 %898
        %v900 = vsub.f32 %v790, %v878
        %v901 = vsub.f32 %v793, %v881
        %v902 = vsub.f32 %v817, %v884
        %v903 = vsub.f32 %v820, %v887
        %v904 = vsub.f32 %v844, %v890
        %v905 = vsub.f32 %v847, %v893
        %v906 = vsub.f32 %v871, %v896
        %v907 = vsub.f32 %v874, %v899
        %v908 = vmul.f32 %v900, 1.442695
        %v909 = vpow.pop %v908
        %v910 = vmul.f32 %v901, 1.442695
        %v911 = vpow.pop %v910
        %v912 = vmul.f32 %v902, 1.442695
        %v913 = vpow.pop %v912
        %v914 = vmul.f32 %v903, 1.442695
        %v915 = vpow.pop %v914
        %v916 = vmul.f32 %v904, 1.442695
        %v917 = vpow.pop %v916
        %v918 = vmul.f32 %v905, 1.442695
        %v919 = vpow.pop %v918
        %v920 = vmul.f32 %v906, 1.442695
        %v921 = vpow.pop %v920
        %v922 = vmul.f32 %v907, 1.442695
        %v923 = vpow.pop %v922
        %v924 = vmul.f32 %v909, %v390
        %v925 = vmul.f32 %v911, %v391
        %v926 = vmul.f32 %v913, %v390
        %v927 = vmul.f32 %v915, %v391
        %v928 = vmul.f32 %v917, %v390
        %v929 = vmul.f32 %v919, %v391
        %v930 = vmul.f32 %v921, %v390
        %v931 = vmul.f32 %v923, %v391
        %v932 = vsel %vm400, %v924, 0.0
        %933 = vadd.xlane.f32.xlu0 %v932
        %v934 = vpop.xlane.xlu0 %933
        %v935 = vsel %vm400, %v925, 0.0
        %936 = vadd.xlane.f32.xlu0 %v935
        %v937 = vpop.xlane.xlu0 %936
        %v938 = vsel %vm400, %v926, 0.0
        %939 = vadd.xlane.f32.xlu0 %v938
        %v940 = vpop.xlane.xlu0 %939
        %v941 = vsel %vm400, %v927, 0.0
        %942 = vadd.xlane.f32.xlu0 %v941
        %v943 = vpop.xlane.xlu0 %942
        %v944 = vsel %vm400, %v928, 0.0
        %945 = vadd.xlane.f32.xlu0 %v944
        %v946 = vpop.xlane.xlu0 %945
        %v947 = vsel %vm400, %v929, 0.0
        %948 = vadd.xlane.f32.xlu0 %v947
        %v949 = vpop.xlane.xlu0 %948
        %v950 = vsel %vm400, %v930, 0.0
        %951 = vadd.xlane.f32.xlu0 %v950
        %v952 = vpop.xlane.xlu0 %951
        %v953 = vsel %vm400, %v931, 0.0
        %954 = vadd.xlane.f32.xlu0 %v953
        %v955 = vpop.xlane.xlu0 %954
        %v956 = vmax.f32 %v934, 1e-16
        %v957 = vmax.f32 %v937, 1e-16
        %v958 = vmax.f32 %v940, 1e-16
        %v959 = vmax.f32 %v943, 1e-16
        %v960 = vmax.f32 %v946, 1e-16
        %v961 = vmax.f32 %v949, 1e-16
        %v962 = vmax.f32 %v952, 1e-16
        %v963 = vmax.f32 %v955, 1e-16
        %v964 = vrcp.pop %v956
        %v965 = vrcp.pop %v957
        %v966 = vrcp.pop %v958
        %v967 = vrcp.pop %v959
        %v968 = vrcp.pop %v960
        %v969 = vrcp.pop %v961
        %v970 = vrcp.pop %v962
        %v971 = vrcp.pop %v963
        %v972 = vmul.f32 %v924, %v964
        %v973 = vmul.f32 %v925, %v965
        %v974 = vmul.f32 %v926, %v966
        %v975 = vmul.f32 %v927, %v967
        %v976 = vmul.f32 %v928, %v968
        %v977 = vmul.f32 %v929, %v969
        %v978 = vmul.f32 %v930, %v970
        %v979 = vmul.f32 %v931, %v971
        %980 = vrot.lane.b32.xlu0 %v549, 96
        %v981 = vpop.permute.xlu0 %980
        %982 = vrot.lane.b32.xlu0 %v550, 96
        %v983 = vpop.permute.xlu0 %982
        %984 = vrot.lane.b32.xlu0 %v551, 96
        %v985 = vpop.permute.xlu0 %984
        %986 = vrot.lane.b32.xlu0 %v552, 96
        %v987 = vpop.permute.xlu0 %986
        %988 = vrot.lane.b32.xlu0 %v612, 96
        %v989 = vpop.permute.xlu0 %988
        %990 = vrot.lane.b32.xlu0 %v614, 96
        %v991 = vpop.permute.xlu0 %990
        %992 = vrot.lane.b32.xlu0 %v616, 96
        %v993 = vpop.permute.xlu0 %992
        %994 = vrot.lane.b32.xlu0 %v618, 96
        %v995 = vpop.permute.xlu0 %994
        %996 = vrot.lane.b32.xlu0 %v620, 96
        %v997 = vpop.permute.xlu0 %996
        %998 = vrot.lane.b32.xlu0 %v622, 96
        %v999 = vpop.permute.xlu0 %998
        %1000 = vrot.lane.b32.xlu0 %v624, 96
        %v1001 = vpop.permute.xlu0 %1000
        %1002 = vrot.lane.b32.xlu0 %v626, 96
        %v1003 = vpop.permute.xlu0 %1002
        %1004 = vrot.lane.b32.xlu0 %v628, 96
        %v1005 = vpop.permute.xlu0 %1004
        %1006 = vrot.lane.b32.xlu0 %v630, 96
        %v1007 = vpop.permute.xlu0 %1006
        %1008 = vrot.lane.b32.xlu0 %v632, 96
        %v1009 = vpop.permute.xlu0 %1008
        %1010 = vrot.lane.b32.xlu0 %v634, 96
        %v1011 = vpop.permute.xlu0 %1010
        %1028 = vxpose.xlu0.b32.start [1/16] %v981, 128
        %1029 = vxpose.xlu0.b32.cont [2/16] %v983, 128
        %1030 = vxpose.xlu0.b32.cont [3/16] %v985, 128
        %1031 = vxpose.xlu0.b32.cont [4/16] %v987, 128
        %1032 = vxpose.xlu0.b32.cont [5/16] 0.0, 128
        %1033 = vxpose.xlu0.b32.cont [6/16] 0.0, 128
        %1034 = vxpose.xlu0.b32.cont [7/16] 0.0, 128
        %1035 = vxpose.xlu0.b32.cont [8/16] 0.0, 128
        %1036 = vxpose.xlu0.b32.cont [9/16] 0.0, 128
        %1037 = vxpose.xlu0.b32.cont [10/16] 0.0, 128
        %1038 = vxpose.xlu0.b32.cont [11/16] 0.0, 128
        %1039 = vxpose.xlu0.b32.cont [12/16] 0.0, 128
        %1040 = vxpose.xlu0.b32.cont [13/16] 0.0, 128
        %1041 = vxpose.xlu0.b32.cont [14/16] 0.0, 128
        %1042 = vxpose.xlu0.b32.cont [15/16] 0.0, 128
        %1043 = vxpose.xlu0.b32.end [16/16] 0.0, 128
        %v1044 = vpop.trf.xlu0
        %v1045 = vpop.trf.xlu0
        %v1046 = vpop.trf.xlu0
        %v1047 = vpop.trf.xlu0
        %v1048 = vpop.trf.xlu0
        %v1049 = vpop.trf.xlu0
        %v1050 = vpop.trf.xlu0
        %v1051 = vpop.trf.xlu0
        %v1052 = vpop.trf.xlu0
        %v1053 = vpop.trf.xlu0
        %v1054 = vpop.trf.xlu0
        %v1055 = vpop.trf.xlu0
        %v1056 = vpop.trf.xlu0
        %v1057 = vpop.trf.xlu0
        %v1058 = vpop.trf.xlu0
        %v1059 = vpop.trf.xlu0
        %1060 = vxpose.xlu0.b32.start [1/16] %v989, 128
        %1061 = vxpose.xlu0.b32.cont [2/16] %v991, 128
        %1062 = vxpose.xlu0.b32.cont [3/16] %v993, 128
        %1063 = vxpose.xlu0.b32.cont [4/16] %v995, 128
        %1064 = vxpose.xlu0.b32.cont [5/16] 0.0, 128
        %1065 = vxpose.xlu0.b32.cont [6/16] 0.0, 128
        %1066 = vxpose.xlu0.b32.cont [7/16] 0.0, 128
        %1067 = vxpose.xlu0.b32.cont [8/16] 0.0, 128
        %1068 = vxpose.xlu0.b32.cont [9/16] 0.0, 128
        %1069 = vxpose.xlu0.b32.cont [10/16] 0.0, 128
        %1070 = vxpose.xlu0.b32.cont [11/16] 0.0, 128
        %1071 = vxpose.xlu0.b32.cont [12/16] 0.0, 128
        %1072 = vxpose.xlu0.b32.cont [13/16] 0.0, 128
        %1073 = vxpose.xlu0.b32.cont [14/16] 0.0, 128
        %1074 = vxpose.xlu0.b32.cont [15/16] 0.0, 128
        %1075 = vxpose.xlu0.b32.end [16/16] 0.0, 128
        %v1076 = vpop.trf.xlu0
        %v1077 = vpop.trf.xlu0
        %v1078 = vpop.trf.xlu0
        %v1079 = vpop.trf.xlu0
        %v1080 = vpop.trf.xlu0
        %v1081 = vpop.trf.xlu0
        %v1082 = vpop.trf.xlu0
        %v1083 = vpop.trf.xlu0
        %v1084 = vpop.trf.xlu0
        %v1085 = vpop.trf.xlu0
        %v1086 = vpop.trf.xlu0
        %v1087 = vpop.trf.xlu0
        %v1088 = vpop.trf.xlu0
        %v1089 = vpop.trf.xlu0
        %v1090 = vpop.trf.xlu0
        %v1091 = vpop.trf.xlu0
        %1092 = vxpose.xlu0.b32.start [1/16] %v997, 128
        %1093 = vxpose.xlu0.b32.cont [2/16] %v999, 128
        %1094 = vxpose.xlu0.b32.cont [3/16] %v1001, 128
        %1095 = vxpose.xlu0.b32.cont [4/16] %v1003, 128
        %1096 = vxpose.xlu0.b32.cont [5/16] 0.0, 128
        %1097 = vxpose.xlu0.b32.cont [6/16] 0.0, 128
        %1098 = vxpose.xlu0.b32.cont [7/16] 0.0, 128
        %1099 = vxpose.xlu0.b32.cont [8/16] 0.0, 128
        %1100 = vxpose.xlu0.b32.cont [9/16] 0.0, 128
        %1101 = vxpose.xlu0.b32.cont [10/16] 0.0, 128
        %1102 = vxpose.xlu0.b32.cont [11/16] 0.0, 128
        %1103 = vxpose.xlu0.b32.cont [12/16] 0.0, 128
        %1104 = vxpose.xlu0.b32.cont [13/16] 0.0, 128
        %1105 = vxpose.xlu0.b32.cont [14/16] 0.0, 128
        %1106 = vxpose.xlu0.b32.cont [15/16] 0.0, 128
        %1107 = vxpose.xlu0.b32.end [16/16] 0.0, 128
        %v1108 = vpop.trf.xlu0
        %v1109 = vpop.trf.xlu0
        %v1110 = vpop.trf.xlu0
        %v1111 = vpop.trf.xlu0
        %v1112 = vpop.trf.xlu0
        %v1113 = vpop.trf.xlu0
        %v1114 = vpop.trf.xlu0
        %v1115 = vpop.trf.xlu0
        %v1116 = vpop.trf.xlu0
        %v1117 = vpop.trf.xlu0
        %v1118 = vpop.trf.xlu0
        %v1119 = vpop.trf.xlu0
        %v1120 = vpop.trf.xlu0
        %v1121 = vpop.trf.xlu0
        %v1122 = vpop.trf.xlu0
        %v1123 = vpop.trf.xlu0
        %1124 = vxpose.xlu0.b32.start [1/16] %v1005, 128
        %1125 = vxpose.xlu0.b32.cont [2/16] %v1007, 128
        %1126 = vxpose.xlu0.b32.cont [3/16] %v1009, 128
        %1127 = vxpose.xlu0.b32.cont [4/16] %v1011, 128
        %1128 = vxpose.xlu0.b32.cont [5/16] 0.0, 128
        %1129 = vxpose.xlu0.b32.cont [6/16] 0.0, 128
        %1130 = vxpose.xlu0.b32.cont [7/16] 0.0, 128
        %1131 = vxpose.xlu0.b32.cont [8/16] 0.0, 128
        %1132 = vxpose.xlu0.b32.cont [9/16] 0.0, 128
        %1133 = vxpose.xlu0.b32.cont [10/16] 0.0, 128
        %1134 = vxpose.xlu0.b32.cont [11/16] 0.0, 128
        %1135 = vxpose.xlu0.b32.cont [12/16] 0.0, 128
        %1136 = vxpose.xlu0.b32.cont [13/16] 0.0, 128
        %1137 = vxpose.xlu0.b32.cont [14/16] 0.0, 128
        %1138 = vxpose.xlu0.b32.cont [15/16] 0.0, 128
        %1139 = vxpose.xlu0.b32.end [16/16] 0.0, 128
        %v1140 = vpop.trf.xlu0
        %v1141 = vpop.trf.xlu0
        %v1142 = vpop.trf.xlu0
        %v1143 = vpop.trf.xlu0
        %v1144 = vpop.trf.xlu0
        %v1145 = vpop.trf.xlu0
        %v1146 = vpop.trf.xlu0
        %v1147 = vpop.trf.xlu0
        %v1148 = vpop.trf.xlu0
        %v1149 = vpop.trf.xlu0
        %v1150 = vpop.trf.xlu0
        %v1151 = vpop.trf.xlu0
        %v1152 = vpop.trf.xlu0
        %v1153 = vpop.trf.xlu0
        %v1154 = vpop.trf.xlu0
        %v1155 = vpop.trf.xlu0
        %v1157 = vsel %vm400, %v1044, 0
        %v1160 = vsel %vm400, %v972, 0
        %v1163 = vsel %vm400, %v973, 0
        %1165 = vmatpush.xpose.msra.mxu0 0.0
        %1166 = vmatpush.xpose.msra.mxu0 0.0
        %1167 = vmatpush.xpose.msra.mxu0 0.0
        %1168 = vmatpush.xpose.msra.mxu0 0.0
        %1169 = vmatpush.xpose.msra.mxu0 0.0
        %1170 = vmatpush.xpose.msra.mxu0 0.0
        %1171 = vmatpush.xpose.msra.mxu0 0.0
        %1172 = vmatpush.xpose.msra.mxu0 0.0
        %1173 = vmatpush.xpose.msra.mxu0 0.0
        %1174 = vmatpush.xpose.msra.mxu0 0.0
        %1175 = vmatpush.xpose.msra.mxu0 0.0
        %1176 = vmatpush.xpose.msra.mxu0 0.0
        %1177 = vmatpush.xpose.msra.mxu0 0.0
        %1178 = vmatpush.xpose.msra.mxu0 0.0
        %1179 = vmatpush.xpose.msra.mxu0 %v1163
        %1180 = vmatpush.xpose.msra.mxu0 %v1160
        %1181 = vmatmul.f32.gmra.mxu0 %v1157
        %v1182 = vpop.f32.mrf.mxu0
        %v1183 = vadd.f32 0.0, %v1182
        %1184 = vdwg.mxu0
        %v1186 = vsel %vm400, %v1076, 0
        %v1189 = vsel %vm400, %v974, 0
        %v1192 = vsel %vm400, %v975, 0
        %1194 = vmatpush.xpose.msra.mxu0 0.0
        %1195 = vmatpush.xpose.msra.mxu0 0.0
        %1196 = vmatpush.xpose.msra.mxu0 0.0
        %1197 = vmatpush.xpose.msra.mxu0 0.0
        %1198 = vmatpush.xpose.msra.mxu0 0.0
        %1199 = vmatpush.xpose.msra.mxu0 0.0
        %1200 = vmatpush.xpose.msra.mxu0 0.0
        %1201 = vmatpush.xpose.msra.mxu0 0.0
        %1202 = vmatpush.xpose.msra.mxu0 0.0
        %1203 = vmatpush.xpose.msra.mxu0 0.0
        %1204 = vmatpush.xpose.msra.mxu0 0.0
        %1205 = vmatpush.xpose.msra.mxu0 0.0
        %1206 = vmatpush.xpose.msra.mxu0 0.0
        %1207 = vmatpush.xpose.msra.mxu0 0.0
        %1208 = vmatpush.xpose.msra.mxu0 %v1192
        %1209 = vmatpush.xpose.msra.mxu0 %v1189
        %1210 = vmatmul.f32.gmra.mxu0 %v1186
        %v1211 = vpop.f32.mrf.mxu0
        %v1212 = vadd.f32 0.0, %v1211
        %1213 = vdwg.mxu0
        %v1215 = vsel %vm400, %v1108, 0
        %v1218 = vsel %vm400, %v976, 0
        %v1221 = vsel %vm400, %v977, 0
        %1223 = vmatpush.xpose.msra.mxu0 0.0
        %1224 = vmatpush.xpose.msra.mxu0 0.0
        %1225 = vmatpush.xpose.msra.mxu0 0.0
        %1226 = vmatpush.xpose.msra.mxu0 0.0
        %1227 = vmatpush.xpose.msra.mxu0 0.0
        %1228 = vmatpush.xpose.msra.mxu0 0.0
        %1229 = vmatpush.xpose.msra.mxu0 0.0
        %1230 = vmatpush.xpose.msra.mxu0 0.0
        %1231 = vmatpush.xpose.msra.mxu0 0.0
        %1232 = vmatpush.xpose.msra.mxu0 0.0
        %1233 = vmatpush.xpose.msra.mxu0 0.0
        %1234 = vmatpush.xpose.msra.mxu0 0.0
        %1235 = vmatpush.xpose.msra.mxu0 0.0
        %1236 = vmatpush.xpose.msra.mxu0 0.0
        %1237 = vmatpush.xpose.msra.mxu0 %v1221
        %1238 = vmatpush.xpose.msra.mxu0 %v1218
        %1239 = vmatmul.f32.gmra.mxu0 %v1215
        %v1240 = vpop.f32.mrf.mxu0
        %v1241 = vadd.f32 0.0, %v1240
        %1242 = vdwg.mxu0
        %v1244 = vsel %vm400, %v1140, 0
        %v1247 = vsel %vm400, %v978, 0
        %v1250 = vsel %vm400, %v979, 0
        %1252 = vmatpush.xpose.msra.mxu0 0.0
        %1253 = vmatpush.xpose.msra.mxu0 0.0
        %1254 = vmatpush.xpose.msra.mxu0 0.0
        %1255 = vmatpush.xpose.msra.mxu0 0.0
        %1256 = vmatpush.xpose.msra.mxu0 0.0
        %1257 = vmatpush.xpose.msra.mxu0 0.0
        %1258 = vmatpush.xpose.msra.mxu0 0.0
        %1259 = vmatpush.xpose.msra.mxu0 0.0
        %1260 = vmatpush.xpose.msra.mxu0 0.0
        %1261 = vmatpush.xpose.msra.mxu0 0.0
        %1262 = vmatpush.xpose.msra.mxu0 0.0
        %1263 = vmatpush.xpose.msra.mxu0 0.0
        %1264 = vmatpush.xpose.msra.mxu0 0.0
        %1265 = vmatpush.xpose.msra.mxu0 0.0
        %1266 = vmatpush.xpose.msra.mxu0 %v1250
        %1267 = vmatpush.xpose.msra.mxu0 %v1247
        %1268 = vmatmul.f32.gmra.mxu0 %v1244
        %v1269 = vpop.f32.mrf.mxu0
        %v1270 = vadd.f32 0.0, %v1269
        %1271 = vdwg.mxu0
        %1272 = vxpose.xlu0.b32.start [1/16] %v1183, 128
        %1273 = vxpose.xlu0.b32.cont [2/16] 0.0, 128
        %1274 = vxpose.xlu0.b32.cont [3/16] 0.0, 128
        %1275 = vxpose.xlu0.b32.cont [4/16] 0.0, 128
        %1276 = vxpose.xlu0.b32.cont [5/16] 0.0, 128
        %1277 = vxpose.xlu0.b32.cont [6/16] 0.0, 128
        %1278 = vxpose.xlu0.b32.cont [7/16] 0.0, 128
        %1279 = vxpose.xlu0.b32.cont [8/16] 0.0, 128
        %1280 = vxpose.xlu0.b32.cont [9/16] 0.0, 128
        %1281 = vxpose.xlu0.b32.cont [10/16] 0.0, 128
        %1282 = vxpose.xlu0.b32.cont [11/16] 0.0, 128
        %1283 = vxpose.xlu0.b32.cont [12/16] 0.0, 128
        %1284 = vxpose.xlu0.b32.cont [13/16] 0.0, 128
        %1285 = vxpose.xlu0.b32.cont [14/16] 0.0, 128
        %1286 = vxpose.xlu0.b32.cont [15/16] 0.0, 128
        %1287 = vxpose.xlu0.b32.end [16/16] 0.0, 128
        %v1288 = vpop.trf.xlu0
        %v1289 = vpop.trf.xlu0
        %v1290 = vpop.trf.xlu0
        %v1291 = vpop.trf.xlu0
        %v1292 = vpop.trf.xlu0
        %v1293 = vpop.trf.xlu0
        %v1294 = vpop.trf.xlu0
        %v1295 = vpop.trf.xlu0
        %v1296 = vpop.trf.xlu0
        %v1297 = vpop.trf.xlu0
        %v1298 = vpop.trf.xlu0
        %v1299 = vpop.trf.xlu0
        %v1300 = vpop.trf.xlu0
        %v1301 = vpop.trf.xlu0
        %v1302 = vpop.trf.xlu0
        %v1303 = vpop.trf.xlu0
        %1304 = vxpose.xlu0.b32.start [1/16] %v1212, 128
        %1305 = vxpose.xlu0.b32.cont [2/16] 0.0, 128
        %1306 = vxpose.xlu0.b32.cont [3/16] 0.0, 128
        %1307 = vxpose.xlu0.b32.cont [4/16] 0.0, 128
        %1308 = vxpose.xlu0.b32.cont [5/16] 0.0, 128
        %1309 = vxpose.xlu0.b32.cont [6/16] 0.0, 128
        %1310 = vxpose.xlu0.b32.cont [7/16] 0.0, 128
        %1311 = vxpose.xlu0.b32.cont [8/16] 0.0, 128
        %1312 = vxpose.xlu0.b32.cont [9/16] 0.0, 128
        %1313 = vxpose.xlu0.b32.cont [10/16] 0.0, 128
        %1314 = vxpose.xlu0.b32.cont [11/16] 0.0, 128
        %1315 = vxpose.xlu0.b32.cont [12/16] 0.0, 128
        %1316 = vxpose.xlu0.b32.cont [13/16] 0.0, 128
        %1317 = vxpose.xlu0.b32.cont [14/16] 0.0, 128
        %1318 = vxpose.xlu0.b32.cont [15/16] 0.0, 128
        %1319 = vxpose.xlu0.b32.end [16/16] 0.0, 128
        %v1320 = vpop.trf.xlu0
        %v1321 = vpop.trf.xlu0
        %v1322 = vpop.trf.xlu0
        %v1323 = vpop.trf.xlu0
        %v1324 = vpop.trf.xlu0
        %v1325 = vpop.trf.xlu0
        %v1326 = vpop.trf.xlu0
        %v1327 = vpop.trf.xlu0
        %v1328 = vpop.trf.xlu0
        %v1329 = vpop.trf.xlu0
        %v1330 = vpop.trf.xlu0
        %v1331 = vpop.trf.xlu0
        %v1332 = vpop.trf.xlu0
        %v1333 = vpop.trf.xlu0
        %v1334 = vpop.trf.xlu0
        %v1335 = vpop.trf.xlu0
        %1336 = vxpose.xlu0.b32.start [1/16] %v1241, 128
        %1337 = vxpose.xlu0.b32.cont [2/16] 0.0, 128
        %1338 = vxpose.xlu0.b32.cont [3/16] 0.0, 128
        %1339 = vxpose.xlu0.b32.cont [4/16] 0.0, 128
        %1340 = vxpose.xlu0.b32.cont [5/16] 0.0, 128
        %1341 = vxpose.xlu0.b32.cont [6/16] 0.0, 128
        %1342 = vxpose.xlu0.b32.cont [7/16] 0.0, 128
        %1343 = vxpose.xlu0.b32.cont [8/16] 0.0, 128
        %1344 = vxpose.xlu0.b32.cont [9/16] 0.0, 128
        %1345 = vxpose.xlu0.b32.cont [10/16] 0.0, 128
        %1346 = vxpose.xlu0.b32.cont [11/16] 0.0, 128
        %1347 = vxpose.xlu0.b32.cont [12/16] 0.0, 128
        %1348 = vxpose.xlu0.b32.cont [13/16] 0.0, 128
        %1349 = vxpose.xlu0.b32.cont [14/16] 0.0, 128
        %1350 = vxpose.xlu0.b32.cont [15/16] 0.0, 128
        %1351 = vxpose.xlu0.b32.end [16/16] 0.0, 128
        %v1352 = vpop.trf.xlu0
        %v1353 = vpop.trf.xlu0
        %v1354 = vpop.trf.xlu0
        %v1355 = vpop.trf.xlu0
        %v1356 = vpop.trf.xlu0
        %v1357 = vpop.trf.xlu0
        %v1358 = vpop.trf.xlu0
        %v1359 = vpop.trf.xlu0
        %v1360 = vpop.trf.xlu0
        %v1361 = vpop.trf.xlu0
        %v1362 = vpop.trf.xlu0
        %v1363 = vpop.trf.xlu0
        %v1364 = vpop.trf.xlu0
        %v1365 = vpop.trf.xlu0
        %v1366 = vpop.trf.xlu0
        %v1367 = vpop.trf.xlu0
        %1368 = vxpose.xlu0.b32.start [1/16] %v1270, 128
        %1369 = vxpose.xlu0.b32.cont [2/16] 0.0, 128
        %1370 = vxpose.xlu0.b32.cont [3/16] 0.0, 128
        %1371 = vxpose.xlu0.b32.cont [4/16] 0.0, 128
        %1372 = vxpose.xlu0.b32.cont [5/16] 0.0, 128
        %1373 = vxpose.xlu0.b32.cont [6/16] 0.0, 128
        %1374 = vxpose.xlu0.b32.cont [7/16] 0.0, 128
        %1375 = vxpose.xlu0.b32.cont [8/16] 0.0, 128
        %1376 = vxpose.xlu0.b32.cont [9/16] 0.0, 128
        %1377 = vxpose.xlu0.b32.cont [10/16] 0.0, 128
        %1378 = vxpose.xlu0.b32.cont [11/16] 0.0, 128
        %1379 = vxpose.xlu0.b32.cont [12/16] 0.0, 128
        %1380 = vxpose.xlu0.b32.cont [13/16] 0.0, 128
        %1381 = vxpose.xlu0.b32.cont [14/16] 0.0, 128
        %1382 = vxpose.xlu0.b32.cont [15/16] 0.0, 128
        %1383 = vxpose.xlu0.b32.end [16/16] 0.0, 128
        %v1384 = vpop.trf.xlu0
        %v1385 = vpop.trf.xlu0
        %v1386 = vpop.trf.xlu0
        %v1387 = vpop.trf.xlu0
        %v1388 = vpop.trf.xlu0
        %v1389 = vpop.trf.xlu0
        %v1390 = vpop.trf.xlu0
        %v1391 = vpop.trf.xlu0
        %v1392 = vpop.trf.xlu0
        %v1393 = vpop.trf.xlu0
        %v1394 = vpop.trf.xlu0
        %v1395 = vpop.trf.xlu0
        %v1396 = vpop.trf.xlu0
        %v1397 = vpop.trf.xlu0
        %v1398 = vpop.trf.xlu0
        %v1399 = vpop.trf.xlu0
        %v1400 = vrot.slane %v1352, 4
        %vm1401 = vcmask 1047556
        %v1402 = vsel %vm1401, %v1400, %v1288
        %v1403 = vrot.slane %v1288, 4
        %v1404 = vsel %vm1401, %v1352, %v1403
        %v1406 = vunpack.c.l.s4 1983009808
        %v1407 = vunpack.c.0.s8 %v1406
        %v1408 = vperm.slane %v1402, %v1407
        %v1410 = vunpack.c.l.s4 1983009808
        %v1411 = vunpack.c.0.s8 %v1410
        %v1412 = vperm.slane %v1404, %v1411
        %v1413 = vrot.slane %v1384, 4
        %v1414 = vsel %vm1401, %v1413, %v1320
        %v1415 = vrot.slane %v1320, 4
        %v1416 = vsel %vm1401, %v1384, %v1415
        %v1418 = vunpack.c.l.s4 1983009808
        %v1419 = vunpack.c.0.s8 %v1418
        %v1420 = vperm.slane %v1414, %v1419
        %v1422 = vunpack.c.l.s4 1983009808
        %v1423 = vunpack.c.0.s8 %v1422
        %v1424 = vperm.slane %v1416, %v1423
        %v1425 = vrot.slane %v1420, 4
        %v1426 = vsel %vm1401, %v1425, %v1408
        %v1427 = vrot.slane %v1408, 4
        %v1428 = vsel %vm1401, %v1420, %v1427
        %v1430 = vunpack.c.l.s4 1934713408
        %v1431 = vunpack.c.0.s8 %v1430
        %v1432 = vperm.slane %v1426, %v1431
        %v1434 = vunpack.c.l.s4 1934713408
        %v1435 = vunpack.c.0.s8 %v1434
        %v1436 = vperm.slane %v1428, %v1435
        %v1437 = vrot.slane %v1424, 4
        %v1438 = vsel %vm1401, %v1437, %v1412
        %v1439 = vrot.slane %v1412, 4
        %v1440 = vsel %vm1401, %v1424, %v1439
        %v1442 = vunpack.c.l.s4 1934713408
        %v1443 = vunpack.c.0.s8 %v1442
        %v1444 = vperm.slane %v1438, %v1443
        %v1446 = vunpack.c.l.s4 1934713408
        %v1447 = vunpack.c.0.s8 %v1446
        %v1448 = vperm.slane %v1440, %v1447
        %v1449 = vrot.slane %v1432, 4
        %v1450 = vsel %vm1401, 0.0, %v1449
        %v1451 = vrot.slane %v1436, 4
        %v1452 = vsel %vm1401, 0.0, %v1451
        %v1453 = vrot.slane %v1444, 4
        %v1454 = vsel %vm1401, 0.0, %v1453
        %v1455 = vrot.slane %v1448, 4
        %v1456 = vsel %vm1401, 0.0, %v1455
        %v1457 = vrot.slane %v1353, 4
        %v1458 = vsel %vm1401, %v1457, %v1289
        %v1459 = vrot.slane %v1289, 4
        %v1460 = vsel %vm1401, %v1353, %v1459
        %v1462 = vunpack.c.l.s4 1983009808
        %v1463 = vunpack.c.0.s8 %v1462
        %v1464 = vperm.slane %v1458, %v1463
        %v1466 = vunpack.c.l.s4 1983009808
        %v1467 = vunpack.c.0.s8 %v1466
        %v1468 = vperm.slane %v1460, %v1467
        %v1469 = vrot.slane %v1385, 4
        %v1470 = vsel %vm1401, %v1469, %v1321
        %v1471 = vrot.slane %v1321, 4
        %v1472 = vsel %vm1401, %v1385, %v1471
        %v1474 = vunpack.c.l.s4 1983009808
        %v1475 = vunpack.c.0.s8 %v1474
        %v1476 = vperm.slane %v1470, %v1475
        %v1478 = vunpack.c.l.s4 1983009808
        %v1479 = vunpack.c.0.s8 %v1478
        %v1480 = vperm.slane %v1472, %v1479
        %v1481 = vrot.slane %v1476, 4
        %v1482 = vsel %vm1401, %v1481, %v1464
        %v1483 = vrot.slane %v1464, 4
        %v1484 = vsel %vm1401, %v1476, %v1483
        %v1486 = vunpack.c.l.s4 1934713408
        %v1487 = vunpack.c.0.s8 %v1486
        %v1488 = vperm.slane %v1482, %v1487
        %v1490 = vunpack.c.l.s4 1934713408
        %v1491 = vunpack.c.0.s8 %v1490
        %v1492 = vperm.slane %v1484, %v1491
        %v1493 = vrot.slane %v1480, 4
        %v1494 = vsel %vm1401, %v1493, %v1468
        %v1495 = vrot.slane %v1468, 4
        %v1496 = vsel %vm1401, %v1480, %v1495
        %v1498 = vunpack.c.l.s4 1934713408
        %v1499 = vunpack.c.0.s8 %v1498
        %v1500 = vperm.slane %v1494, %v1499
        %v1502 = vunpack.c.l.s4 1934713408
        %v1503 = vunpack.c.0.s8 %v1502
        %v1504 = vperm.slane %v1496, %v1503
        %v1505 = vrot.slane %v1488, 4
        %v1506 = vsel %vm1401, 0.0, %v1505
        %v1507 = vrot.slane %v1492, 4
        %v1508 = vsel %vm1401, 0.0, %v1507
        %v1509 = vrot.slane %v1500, 4
        %v1510 = vsel %vm1401, 0.0, %v1509
        %v1511 = vrot.slane %v1504, 4
        %v1512 = vsel %vm1401, 0.0, %v1511
        %v1513 = vsel %vm1401, %v1451, %v1432
        %v1515 = vunpack.c.l.s4 1983009808
        %v1516 = vunpack.c.0.s8 %v1515
        %v1517 = vperm.slane %v1513, %v1516
        %v1518 = vrot.slane %v1452, 4
        %v1519 = vsel %vm1401, %v1518, %v1450
        %v1521 = vunpack.c.l.s4 1983009808
        %v1522 = vunpack.c.0.s8 %v1521
        %v1523 = vperm.slane %v1519, %v1522
        %v1524 = vsel %vm1401, %v1455, %v1444
        %v1526 = vunpack.c.l.s4 1983009808
        %v1527 = vunpack.c.0.s8 %v1526
        %v1528 = vperm.slane %v1524, %v1527
        %v1529 = vrot.slane %v1456, 4
        %v1530 = vsel %vm1401, %v1529, %v1454
        %v1532 = vunpack.c.l.s4 1983009808
        %v1533 = vunpack.c.0.s8 %v1532
        %v1534 = vperm.slane %v1530, %v1533
        %v1535 = vrot.slane %v1523, 4
        %v1536 = vsel %vm1401, %v1535, %v1517
        %v1537 = vrot.slane %v1517, 4
        %v1538 = vsel %vm1401, %v1523, %v1537
        %v1540 = vunpack.c.l.s4 1934713408
        %v1541 = vunpack.c.0.s8 %v1540
        %v1542 = vperm.slane %v1536, %v1541
        %v1544 = vunpack.c.l.s4 1934713408
        %v1545 = vunpack.c.0.s8 %v1544
        %v1546 = vperm.slane %v1538, %v1545
        %v1547 = vrot.slane %v1534, 4
        %v1548 = vsel %vm1401, %v1547, %v1528
        %v1549 = vrot.slane %v1528, 4
        %v1550 = vsel %vm1401, %v1534, %v1549
        %v1552 = vunpack.c.l.s4 1934713408
        %v1553 = vunpack.c.0.s8 %v1552
        %v1554 = vperm.slane %v1548, %v1553
        %v1556 = vunpack.c.l.s4 1934713408
        %v1557 = vunpack.c.0.s8 %v1556
        %v1558 = vperm.slane %v1550, %v1557
        %v1559 = vrot.slane %v1554, 4
        %v1560 = vsel %vm1401, %v1559, %v1542
        %v1561 = vrot.slane %v1542, 4
        %v1562 = vsel %vm1401, %v1554, %v1561
        %v1563 = vrot.slane %v1558, 4
        %v1564 = vsel %vm1401, %v1563, %v1546
        %v1565 = vrot.slane %v1546, 4
        %v1566 = vsel %vm1401, %v1558, %v1565
        %v1567 = vsel %vm1401, %v1507, %v1488
        %v1569 = vunpack.c.l.s4 1983009808
        %v1570 = vunpack.c.0.s8 %v1569
        %v1571 = vperm.slane %v1567, %v1570
        %v1572 = vrot.slane %v1508, 4
        %v1573 = vsel %vm1401, %v1572, %v1506
        %v1575 = vunpack.c.l.s4 1983009808
        %v1576 = vunpack.c.0.s8 %v1575
        %v1577 = vperm.slane %v1573, %v1576
        %v1578 = vsel %vm1401, %v1511, %v1500
        %v1580 = vunpack.c.l.s4 1983009808
        %v1581 = vunpack.c.0.s8 %v1580
        %v1582 = vperm.slane %v1578, %v1581
        %v1583 = vrot.slane %v1512, 4
        %v1584 = vsel %vm1401, %v1583, %v1510
        %v1586 = vunpack.c.l.s4 1983009808
        %v1587 = vunpack.c.0.s8 %v1586
        %v1588 = vperm.slane %v1584, %v1587
        %v1589 = vrot.slane %v1577, 4
        %v1590 = vsel %vm1401, %v1589, %v1571
        %v1591 = vrot.slane %v1571, 4
        %v1592 = vsel %vm1401, %v1577, %v1591
        %v1594 = vunpack.c.l.s4 1934713408
        %v1595 = vunpack.c.0.s8 %v1594
        %v1596 = vperm.slane %v1590, %v1595
        %v1598 = vunpack.c.l.s4 1934713408
        %v1599 = vunpack.c.0.s8 %v1598
        %v1600 = vperm.slane %v1592, %v1599
        %v1601 = vrot.slane %v1588, 4
        %v1602 = vsel %vm1401, %v1601, %v1582
        %v1603 = vrot.slane %v1582, 4
        %v1604 = vsel %vm1401, %v1588, %v1603
        %v1606 = vunpack.c.l.s4 1934713408
        %v1607 = vunpack.c.0.s8 %v1606
        %v1608 = vperm.slane %v1602, %v1607
        %v1610 = vunpack.c.l.s4 1934713408
        %v1611 = vunpack.c.0.s8 %v1610
        %v1612 = vperm.slane %v1604, %v1611
        %v1613 = vrot.slane %v1608, 4
        %v1614 = vsel %vm1401, %v1613, %v1596
        %v1615 = vrot.slane %v1596, 4
        %v1616 = vsel %vm1401, %v1608, %v1615
        %v1617 = vrot.slane %v1612, 4
        %v1618 = vsel %vm1401, %v1617, %v1600
        %v1619 = vrot.slane %v1600, 4
        %v1620 = vsel %vm1401, %v1612, %v1619
        %1623 = vrot.lane.b32.xlu0 %v1562, 8
        %v1624 = vpop.permute.xlu0 %1623
        %1625 = vrot.lane.b32.xlu0 %v1616, 8
        %v1626 = vpop.permute.xlu0 %1625
        %1631 = vrot.lane.b32.xlu0 %v1564, 16
        %v1632 = vpop.permute.xlu0 %1631
        %1633 = vrot.lane.b32.xlu0 %v1618, 16
        %v1634 = vpop.permute.xlu0 %1633
        %1639 = vrot.lane.b32.xlu0 %v1566, 24
        %v1640 = vpop.permute.xlu0 %1639
        %1641 = vrot.lane.b32.xlu0 %v1620, 24
        %v1642 = vpop.permute.xlu0 %1641
        %v1645 = vsel %vm767, %v1560, %v1624
        %v1646 = vsel %vm767, %v1614, %v1626
        %v1647 = vsel %vm438, %v1645, %v1632
        %v1648 = vsel %vm438, %v1646, %v1634
        %vm1649 = vcmask 195584
        %v1650 = vsel %vm1649, %v1647, %v1640
        %v1651 = vsel %vm1649, %v1648, %v1642
        %1652 = vrot.lane.b32.xlu0 %v425, 32
        %v1653 = vpop.permute.xlu0 %1652
        %1654 = vrot.lane.b32.xlu0 %v428, 32
        %v1655 = vpop.permute.xlu0 %1654
        %v1658 = vadd.f32 %v1650, %v1653
        %v1659 = vadd.f32 %v1651, %v1655
        %v1660 = vmax.f32 %v1658, 0.0
        %v1661 = vmax.f32 %v1659, 0.0
        %1662 = vst.msk [vmem:[#allocation2] sm:$0xff] %vm400, %v1660
        %1663 = vst.msk [vmem:[#allocation2 + $0x8] sm:$0xff] %vm400, %v1661
        %p1664 = scmp.eq.s32.totalorder %s21, 1
        // Predicated region
        $region65: #{tpu_custom_call.1} parent=55 // pred_check
          %p1665 = pneg %p1664
        $region66: #{tpu_custom_call.1} parent=55 // pred_check_branch
          %1667 = sbr.rel (%p1665) target = $region68
        $region67: #{tpu_custom_call.1} parent=55 // pred_region
          %v1668 = vld [vmem:[%s7] sm:$0xff]
          %v1669 = vld [vmem:[%s7 + $0x8] sm:$0xff]
          %v1670 = vld [vmem:[%s7 + $0x10] sm:$0xff]
          %v1671 = vld [vmem:[%s7 + $0x18] sm:$0xff]
          %v1672 = vld [vmem:[%s8] sm:$0x1]
          %v1674 = vperm.slane %v1672, 0
          %v1677 = vsel %vm400, %v1660, 0
          %v1680 = vsel %vm400, %v1661, 0
          %1682 = vmatpush.msra.mxu0 0.0
          %1683 = vmatpush.msra.mxu0 0.0
          %1684 = vmatpush.msra.mxu0 0.0
          %1685 = vmatpush.msra.mxu0 0.0
          %1686 = vmatpush.msra.mxu0 0.0
          %1687 = vmatpush.msra.mxu0 0.0
          %1688 = vmatpush.msra.mxu0 0.0
          %1689 = vmatpush.msra.mxu0 0.0
          %1690 = vmatpush.msra.mxu0 0.0
          %1691 = vmatpush.msra.mxu0 0.0
          %1692 = vmatpush.msra.mxu0 0.0
          %1693 = vmatpush.msra.mxu0 0.0
          %1694 = vmatpush.msra.mxu0 %v1671
          %1695 = vmatpush.msra.mxu0 %v1670
          %1696 = vmatpush.msra.mxu0 %v1669
          %1697 = vmatpush.msra.mxu0 %v1668
          %1698 = vmatmul.f32.gmra.mxu0 %v1677
          %v1699 = vpop.f32.mrf.mxu0
          %v1700 = vadd.f32 %v1674, %v1699
          %1701 = vmatmul.f32.gmra.mxu0 %v1680
          %v1702 = vpop.f32.mrf.mxu0
          %v1703 = vadd.f32 %v1674, %v1702
          %1704 = vdwg.mxu0
          %1705 = vst.msk [vmem:[%s9] sm:$0xff] %vm767, %v1700
          %1706 = vst.msk [vmem:[%s9 + $0x8] sm:$0xff] %vm767, %v1703
        $region68: #{tpu_custom_call.1} parent=55 // pred_fallthru
          _
        // Predicated region
        $region69: #{tpu_custom_call.1} parent=55 // pred_check
          %p1707 = pneg %p238
        $region70: #{tpu_custom_call.1} parent=55 // pred_check_branch
          %1709 = sbr.rel (%p1707) target = $region72
        $region71: #{tpu_custom_call.1} parent=55 // pred_region
          _
        $region72: #{tpu_custom_call.1} parent=55 // pred_fallthru
          _
        // Predicated region
        $region73: #{tpu_custom_call.1} parent=55 // pred_check
          %p1710 = pneg %p238
        $region74: #{tpu_custom_call.1} parent=55 // pred_check_branch
          %1712 = sbr.rel (%p1710) target = $region76
        $region75: #{tpu_custom_call.1} parent=55 // pred_region
          _
        $region76: #{tpu_custom_call.1} parent=55 // pred_fallthru
          _
      $region56: #{tpu_custom_call.1} parent=5 // pred_fallthru
        _
      %p1713 = scmp.le.s32.totalorder 2, %s16
      // Predicated region
      $region77: #{tpu_custom_call.1} parent=5 // pred_check
        %p1714 = pneg %p1713
      $region78: #{tpu_custom_call.1} parent=5 // pred_check_branch
        %1716 = sbr.rel (%p1714) target = $region80
      $region79: #{tpu_custom_call.1} parent=5 // pred_region
        %s1717 = ssub.s32 %s16, 2
      $region80: #{tpu_custom_call.1} parent=5 // pred_fallthru
        _
    $region6: #{tpu_custom_call.1} parent=1 // loop_footer
      %s20 = sadd.s32 1, %s16
    $region7: #{tpu_custom_call.1} parent=1 // loop_footer_branch
      %15 = sbr.rel target = $region3
    $region8: #{tpu_custom_call.1} parent=1 // loop_exit
      _
    %1718 = vsyncpa [#allocation4], 1
    %s1719 = scalar_lea.sflag [#allocation4], 1
    %1720 = vsyncpa %s1719, 1

</llo_original>
